<compile_context>
chip_gen: v5e
topology: v5e:2x2
jax: 0.10.0
libtpu: 0.0.40
codegen_flags: <defaults>
</compile_context>

<pallas_src>
import math

import jax
import jax.numpy as jnp
from jax.experimental import pallas as pl
from jax.experimental.pallas import tpu as pltpu

_LANE = 128


def _round_up(n, m):
    return ((n + m - 1) // m) * m


def discriminator_kernel(x_ref, w1_ref, b1_ref, w2_ref, b2_ref, w3_ref, b3_ref,
                         o_ref):
    """Whole MLP forward for one batch tile, entirely in VMEM.

    x_ref : (tb, Fp)
    w1_ref: (Fp, Hp)   b1_ref: (1, Hp)
    w2_ref: (Hp, Hp)   b2_ref: (1, Hp)
    w3_ref: (Hp, Op)   b3_ref: (1, Op)
    o_ref : (tb, Op)
    All dims are pre-padded to multiples of 128 by the wrapper.
    """
    x = x_ref[...]

    h1 = jnp.dot(x, w1_ref[...], preferred_element_type=jnp.float32)
    h1 = h1 + b1_ref[...]
    h1 = jnp.where(h1 >= 0, h1, 0.2 * h1)

    h2 = jnp.dot(h1, w2_ref[...], preferred_element_type=jnp.float32)
    h2 = h2 + b2_ref[...]
    h2 = jnp.where(h2 >= 0, h2, 0.2 * h2)

    h3 = jnp.dot(h2, w3_ref[...], preferred_element_type=jnp.float32)
    h3 = h3 + b3_ref[...]

    o_ref[...] = jax.nn.sigmoid(h3).astype(o_ref.dtype)


def discriminator_forward(x, params, *, tile_b=256):
    """x: (B, input_size) float32.  params: dict of (in, out)-layout weights."""
    B, in_dim = x.shape
    hidden = params["w1"].shape[1]
    out_dim = params["w3"].shape[1]
    f32 = jnp.float32

    # Lane-dense padding of every feature dim + batch padding (no assert).
    Fp = _round_up(in_dim, _LANE)
    Hp = _round_up(hidden, _LANE)
    Op = _round_up(out_dim, _LANE)
    # Keep >= 2 grid steps when the batch allows it (v7x dual TensorCores).
    tb = min(tile_b, max(8, _round_up((B + 1) // 2, 8)))
    Bp = _round_up(B, tb)

    x_p = jnp.zeros((Bp, Fp), f32).at[:B, :in_dim].set(x.astype(f32))
    w1_p = jnp.zeros((Fp, Hp), f32).at[:in_dim, :hidden].set(params["w1"])
    b1_p = jnp.zeros((1, Hp), f32).at[:, :hidden].set(params["b1"])
    w2_p = jnp.zeros((Hp, Hp), f32).at[:hidden, :hidden].set(params["w2"])
    b2_p = jnp.zeros((1, Hp), f32).at[:, :hidden].set(params["b2"])
    w3_p = jnp.zeros((Hp, Op), f32).at[:hidden, :out_dim].set(params["w3"])
    b3_p = jnp.zeros((1, Op), f32).at[:, :out_dim].set(params["b3"])

    grid = (Bp // tb,)

    # Batch is tiled along the grid; weights (<~0.5 MiB padded) stay fully
    # resident in VMEM for every grid step (index_map always (0, 0)).
    in_specs = [
        pl.BlockSpec((tb, Fp), lambda i: (i, 0)),   # x
        pl.BlockSpec((Fp, Hp), lambda i: (0, 0)),   # w1
        pl.BlockSpec((1, Hp), lambda i: (0, 0)),    # b1
        pl.BlockSpec((Hp, Hp), lambda i: (0, 0)),   # w2
        pl.BlockSpec((1, Hp), lambda i: (0, 0)),    # b2
        pl.BlockSpec((Hp, Op), lambda i: (0, 0)),   # w3
        pl.BlockSpec((1, Op), lambda i: (0, 0)),    # b3
    ]
    out_specs = pl.BlockSpec((tb, Op), lambda i: (i, 0))

    flops = 2 * Bp * (Fp * Hp + Hp * Hp + Hp * Op)
    bytes_accessed = 4 * (Bp * Fp + Fp * Hp + Hp + Hp * Hp + Hp
                          + Hp * Op + Op + Bp * Op)
    cost = pl.CostEstimate(flops=flops,
                           transcendentals=Bp * Op,   # sigmoid -> exp
                           bytes_accessed=bytes_accessed)

    out_padded = pl.pallas_call(
        discriminator_kernel,
        out_shape=jax.ShapeDtypeStruct((Bp, Op), f32),
        grid_spec=pltpu.PrefetchScalarGridSpec(
            num_scalar_prefetch=0,
            grid=grid,
            in_specs=in_specs,
            out_specs=out_specs,
        ),
        compiler_params=pltpu.CompilerParams(
            dimension_semantics=("parallel",)),
        cost_estimate=cost,
    )(x_p, w1_p, b1_p, w2_p, b2_p, w3_p, b3_p)

    # Strip batch and output-column padding.
    return out_padded[:B, :out_dim]


def init_params(key, input_size, hidden_dim, output_size):
    """Deterministic init mimicking PyTorch nn.Linear default:
    U(-1/sqrt(fan_in), 1/sqrt(fan_in)) for weight and bias."""
    keys = jax.random.split(key, 6)

    def uniform(k, shape, fan_in):
        bound = 1.0 / math.sqrt(fan_in)
        return jax.random.uniform(k, shape, jnp.float32, -bound, bound)

    return {
        # stored as (in, out); biases as (1, out) for 2-D VMEM layout
        "w1": uniform(keys[0], (input_size, hidden_dim), input_size),
        "b1": uniform(keys[1], (1, hidden_dim), input_size),
        "w2": uniform(keys[2], (hidden_dim, hidden_dim), hidden_dim),
        "b2": uniform(keys[3], (1, hidden_dim), hidden_dim),
        "w3": uniform(keys[4], (hidden_dim, output_size), hidden_dim),
        "b3": uniform(keys[5], (1, output_size), hidden_dim),
    }


def reference_forward(x, params):
    """Pure-JAX reference for correctness check."""
    hi = jax.lax.Precision.HIGHEST

    def lrelu(v):
        return jnp.where(v >= 0, v, 0.2 * v)

    h1 = lrelu(jnp.dot(x, params["w1"], precision=hi) + params["b1"])
    h2 = lrelu(jnp.dot(h1, params["w2"], precision=hi) + params["b2"])
    return jax.nn.sigmoid(jnp.dot(h2, params["w3"], precision=hi) + params["b3"])


if __name__ == "__main__":
    # points.mat holds 2-D points -> input_size=2, output_size=1 (real/fake
    # prob); hidden_dim=256 and batch_size=500 as in the original script.
    batch = 500
    input_size = 2
    hidden_dim = 256
    output_size = 1

    key = jax.random.PRNGKey(0)
    k_x, k_p = jax.random.split(key)

    x = jax.random.normal(k_x, (batch, input_size), dtype=jnp.float32)
    params = init_params(k_p, input_size, hidden_dim, output_size)

    out = discriminator_forward(x, params, tile_b=256)
    out = jax.block_until_ready(out)

    ref = reference_forward(x, params)
    assert out.shape == (batch, output_size)
    assert jnp.allclose(out, ref, atol=2e-5, rtol=1e-4), (
        f"mismatch: max abs err {jnp.max(jnp.abs(out - ref))}")

    print("KERNEL_OK")
</pallas_src>

<mosaic_0001>
module attributes {stable_mosaic.version = 11 : i64} {
  func.func @discriminator_kernel(%arg0: i32, %arg1: memref<256x128xf32, #tpu.memory_space<vmem>>, %arg2: memref<128x256xf32, #tpu.memory_space<vmem>>, %arg3: memref<1x256xf32, #tpu.memory_space<vmem>>, %arg4: memref<256x256xf32, #tpu.memory_space<vmem>>, %arg5: memref<1x256xf32, #tpu.memory_space<vmem>>, %arg6: memref<256x128xf32, #tpu.memory_space<vmem>>, %arg7: memref<1x128xf32, #tpu.memory_space<vmem>>, %arg8: memref<256x128xf32, #tpu.memory_space<vmem>>) attributes {dimension_semantics = [#tpu.dimension_semantics<parallel>], iteration_bounds = array<i64: 2>, scalar_prefetch = 0 : i64, scratch_operands = 0 : i64, tpu.core_type = #tpu.core_type<tc>, window_params = [{transform_indices = @transform_0, window_bounds = array<i64: 256, 128>}, {pipeline_mode = #tpu.pipeline_mode<synchronous>, transform_indices = @transform_1, window_bounds = array<i64: 128, 256>}, {pipeline_mode = #tpu.pipeline_mode<synchronous>, transform_indices = @transform_2, window_bounds = array<i64: 1, 256>}, {pipeline_mode = #tpu.pipeline_mode<synchronous>, transform_indices = @transform_3, window_bounds = array<i64: 256, 256>}, {pipeline_mode = #tpu.pipeline_mode<synchronous>, transform_indices = @transform_4, window_bounds = array<i64: 1, 256>}, {pipeline_mode = #tpu.pipeline_mode<synchronous>, transform_indices = @transform_5, window_bounds = array<i64: 256, 128>}, {pipeline_mode = #tpu.pipeline_mode<synchronous>, transform_indices = @transform_6, window_bounds = array<i64: 1, 128>}, {transform_indices = @transform_7, window_bounds = array<i64: 256, 128>}]} {
    %c0 = arith.constant 0 : index
    %c0_0 = arith.constant 0 : index
    %0 = vector.load %arg1[%c0, %c0_0] : memref<256x128xf32, #tpu.memory_space<vmem>>, vector<256x128xf32>
    %c0_1 = arith.constant 0 : index
    %c0_2 = arith.constant 0 : index
    %1 = vector.load %arg2[%c0_1, %c0_2] : memref<128x256xf32, #tpu.memory_space<vmem>>, vector<128x256xf32>
    %cst = arith.constant dense<0.000000e+00> : vector<256x256xf32>
    %2 = tpu.matmul %0, %1, %cst {dimension_numbers = #tpu.dot_dimension_numbers<[1], [0], [0], [1], [0, 0, 1, 1], [], []>} : vector<256x128xf32>, vector<128x256xf32>, vector<256x256xf32> -> vector<256x256xf32>
    %c0_3 = arith.constant 0 : index
    %c0_4 = arith.constant 0 : index
    %3 = vector.load %arg3[%c0_3, %c0_4] : memref<1x256xf32, #tpu.memory_space<vmem>>, vector<1x256xf32>
    %4 = vector.broadcast %3 : vector<1x256xf32> to vector<256x256xf32>
    %5 = arith.addf %2, %4 : vector<256x256xf32>
    %cst_5 = arith.constant 0.000000e+00 : f32
    %6 = vector.broadcast %cst_5 : f32 to vector<256x256xf32>
    %7 = arith.cmpf oge, %5, %6 : vector<256x256xf32>
    %cst_6 = arith.constant 2.000000e-01 : f32
    %8 = vector.broadcast %cst_6 : f32 to vector<256x256xf32>
    %9 = arith.mulf %8, %5 : vector<256x256xf32>
    %10 = arith.select %7, %5, %9 : vector<256x256xi1>, vector<256x256xf32>
    %c0_7 = arith.constant 0 : index
    %c0_8 = arith.constant 0 : index
    %11 = vector.load %arg4[%c0_7, %c0_8] : memref<256x256xf32, #tpu.memory_space<vmem>>, vector<256x256xf32>
    %cst_9 = arith.constant dense<0.000000e+00> : vector<256x256xf32>
    %12 = tpu.matmul %10, %11, %cst_9 {dimension_numbers = #tpu.dot_dimension_numbers<[1], [0], [0], [1], [0, 0, 1, 1], [], []>} : vector<256x256xf32>, vector<256x256xf32>, vector<256x256xf32> -> vector<256x256xf32>
    %c0_10 = arith.constant 0 : index
    %c0_11 = arith.constant 0 : index
    %13 = vector.load %arg5[%c0_10, %c0_11] : memref<1x256xf32, #tpu.memory_space<vmem>>, vector<1x256xf32>
    %14 = vector.broadcast %13 : vector<1x256xf32> to vector<256x256xf32>
    %15 = arith.addf %12, %14 : vector<256x256xf32>
    %cst_12 = arith.constant 0.000000e+00 : f32
    %16 = vector.broadcast %cst_12 : f32 to vector<256x256xf32>
    %17 = arith.cmpf oge, %15, %16 : vector<256x256xf32>
    %cst_13 = arith.constant 2.000000e-01 : f32
    %18 = vector.broadcast %cst_13 : f32 to vector<256x256xf32>
    %19 = arith.mulf %18, %15 : vector<256x256xf32>
    %20 = arith.select %17, %15, %19 : vector<256x256xi1>, vector<256x256xf32>
    %c0_14 = arith.constant 0 : index
    %c0_15 = arith.constant 0 : index
    %21 = vector.load %arg6[%c0_14, %c0_15] : memref<256x128xf32, #tpu.memory_space<vmem>>, vector<256x128xf32>
    %cst_16 = arith.constant dense<0.000000e+00> : vector<256x128xf32>
    %22 = tpu.matmul %20, %21, %cst_16 {dimension_numbers = #tpu.dot_dimension_numbers<[1], [0], [0], [1], [0, 0, 1, 1], [], []>} : vector<256x256xf32>, vector<256x128xf32>, vector<256x128xf32> -> vector<256x128xf32>
    %c0_17 = arith.constant 0 : index
    %c0_18 = arith.constant 0 : index
    %23 = vector.load %arg7[%c0_17, %c0_18] : memref<1x128xf32, #tpu.memory_space<vmem>>, vector<1x128xf32>
    %24 = vector.broadcast %23 : vector<1x128xf32> to vector<256x128xf32>
    %25 = arith.addf %22, %24 : vector<256x128xf32>
    %26 = arith.negf %25 : vector<256x128xf32>
    %27 = math.exp %26 : vector<256x128xf32>
    %cst_19 = arith.constant 1.000000e+00 : f32
    %28 = vector.broadcast %cst_19 : f32 to vector<256x128xf32>
    %29 = arith.addf %28, %27 : vector<256x128xf32>
    %30 = arith.divf %28, %29 : vector<256x128xf32>
    %c0_20 = arith.constant 0 : index
    %c0_21 = arith.constant 0 : index
    %31 = vector.load %arg8[%c0_20, %c0_21] : memref<256x128xf32, #tpu.memory_space<vmem>>, vector<256x128xf32>
    tpu.vector_store %arg8[%c0_20, %c0_21], %30 {strides = array<i32>} : memref<256x128xf32, #tpu.memory_space<vmem>>, vector<256x128xf32>,
    return
  }
  func.func @transform_0(%arg0: i32) -> (i32, i32) {
    %c0_i32 = arith.constant 0 : i32
    %c0_i32_0 = arith.constant 0 : i32
    return %arg0, %c0_i32 : i32, i32
  }
  func.func @transform_1(%arg0: i32) -> (i32, i32) {
    %c0_i32 = arith.constant 0 : i32
    %c0_i32_0 = arith.constant 0 : i32
    %c0_i32_1 = arith.constant 0 : i32
    return %c0_i32, %c0_i32_0 : i32, i32
  }
  func.func @transform_2(%arg0: i32) -> (i32, i32) {
    %c0_i32 = arith.constant 0 : i32
    %c0_i32_0 = arith.constant 0 : i32
    %c0_i32_1 = arith.constant 0 : i32
    return %c0_i32, %c0_i32_0 : i32, i32
  }
  func.func @transform_3(%arg0: i32) -> (i32, i32) {
    %c0_i32 = arith.constant 0 : i32
    %c0_i32_0 = arith.constant 0 : i32
    %c0_i32_1 = arith.constant 0 : i32
    return %c0_i32, %c0_i32_0 : i32, i32
  }
  func.func @transform_4(%arg0: i32) -> (i32, i32) {
    %c0_i32 = arith.constant 0 : i32
    %c0_i32_0 = arith.constant 0 : i32
    %c0_i32_1 = arith.constant 0 : i32
    return %c0_i32, %c0_i32_0 : i32, i32
  }
  func.func @transform_5(%arg0: i32) -> (i32, i32) {
    %c0_i32 = arith.constant 0 : i32
    %c0_i32_0 = arith.constant 0 : i32
    %c0_i32_1 = arith.constant 0 : i32
    return %c0_i32, %c0_i32_0 : i32, i32
  }
  func.func @transform_6(%arg0: i32) -> (i32, i32) {
    %c0_i32 = arith.constant 0 : i32
    %c0_i32_0 = arith.constant 0 : i32
    %c0_i32_1 = arith.constant 0 : i32
    return %c0_i32, %c0_i32_0 : i32, i32
  }
  func.func @transform_7(%arg0: i32) -> (i32, i32) {
    %c0_i32 = arith.constant 0 : i32
    %c0_i32_0 = arith.constant 0 : i32
    return %arg0, %c0_i32 : i32, i32
  }
}

</mosaic_0001>

<llo_original>
// kernel: tpu_custom_call.1
$region0: #{tpu_custom_call.1}
  #allocation0 [shape = 'u32[]', space=smem, size = 0x4, offset = 0x4, fixed_abs, tag = 'smem constant byte address 0x4 - core index']
  #allocation1 [shape = 'u32[72,128]{1,0:T(1,128)}', space=vmem, size = 0x9000, scoped, tag = 'internal scratch']
  %s0 = inlined_call_operand.hbm [shape: f32[512,128], index: 0, kind: input, shape index: {}]
  %s1 = inlined_call_operand.hbm [shape: f32[128,256], index: 1, kind: input, shape index: {}]
  %s2 = inlined_call_operand.hbm [shape: f32[1,256], index: 2, kind: input, shape index: {}]
  %s3 = inlined_call_operand.hbm [shape: f32[256,256], index: 3, kind: input, shape index: {}]
  %s4 = inlined_call_operand.vmem [shape: f32[1,256], index: 4, kind: input, shape index: {}]
  %s5 = inlined_call_operand.hbm [shape: f32[256,128], index: 5, kind: input, shape index: {}]
  %s6 = inlined_call_operand.vmem [shape: f32[1,128], index: 6, kind: input, shape index: {}]
  %s7 = inlined_call_operand.hbm [shape: f32[512,128], index: 7, kind: output, shape index: {}]
  %s8 = sld [smem:[#allocation0]]
  $region81: #{tpu_custom_call.1} parent=0
    _
  %s10 = ssub.s32 1, %s8
  %s11 = scalar_select 0, %s10, %s8
  $region1: #{tpu_custom_call.1} parent=0
    #allocation2 [shape = 'u8[262144]{0}', space=vmem, size = 0x40000, scoped, tag = 'input window, operand 0']
    #allocation3 [shape = 's32[2]{0}', space=sflag, size = 0x8, scoped, tag = 'scoped memory for tpu_custom_call.1']
    #allocation4 [shape = 's32[2]{0}', space=sflag, size = 0x8, scoped, tag = 'scoped memory for tpu_custom_call.1']
    #allocation5 [shape = 'u8[131072]{0}', space=vmem, size = 0x20000, scoped, tag = 'input window, operand 1, single buffered']
    #allocation6 [shape = 's32[1]{0}', space=sflag, size = 0x4, scoped, tag = 'scoped memory for tpu_custom_call.1']
    #allocation7 [shape = 'u8[1024]{0}', space=vmem, size = 0x400, scoped, tag = 'input window, operand 2, single buffered']
    #allocation8 [shape = 'u8[262144]{0}', space=vmem, size = 0x40000, scoped, tag = 'input window, operand 3, single buffered']
    #allocation9 [shape = 's32[1]{0}', space=sflag, size = 0x4, scoped, tag = 'scoped memory for tpu_custom_call.1']
    #allocation10 [shape = 'u8[131072]{0}', space=vmem, size = 0x20000, scoped, tag = 'input window, operand 5, single buffered']
    #allocation11 [shape = 'u8[262144]{0}', space=vmem, size = 0x40000, scoped, tag = 'output window, operand 0']
    %12 = vsyncpa [#allocation3], 0
    %s13 = scalar_lea.sflag [#allocation3], 1
    %14 = vsyncpa %s13, 0
    %15 = vsyncpa [#allocation6], 0
    %16 = vsyncpa [#allocation9], 0
    %17 = vsyncpa [#allocation4], 0
    %s18 = scalar_lea.sflag [#allocation4], 1
    %19 = vsyncpa %s18, 0
    loop: start=0, step=1, limit=4
    $region2: #{tpu_custom_call.1} parent=1 // loop_pre_header
      _
    $region3: #{tpu_custom_call.1} parent=1 // loop_header
      %s21 = sphi 0, %s25
      %p22 = scmp.ge.s32.totalorder %s21, 4
      %s31 = sphi 0, %s33
      %s34 = sphi 0, %s31
      %s35 = sphi 0, %s34
      %s51 = sphi 0, %s35
      %s55 = sphi 0, %s55
      %s57 = sphi 0, %s55
      %s58 = sphi 0, %s57
      %s72 = sphi 0, %s58
      %s76 = sphi 0, %s76
      %s78 = sphi 0, %s76
      %s79 = sphi 0, %s78
      %s93 = sphi 0, %s79
      %s97 = sphi 0, %s97
      %s99 = sphi 0, %s97
      %s100 = sphi 0, %s99
      %s114 = sphi 0, %s100
      %s118 = sphi 0, %s118
      %s120 = sphi 0, %s118
      %s121 = sphi 0, %s120
      %s135 = sphi 0, %s121
      %s139 = sphi 0, %s139
      %s141 = sphi 0, %s139
      %s142 = sphi 0, %s141
      %s156 = sphi 0, %s142
      %s160 = sphi 0, %s160
      %s162 = sphi 0, %s160
      %s163 = sphi 0, %s162
      %s177 = sphi 0, %s163
      %s183 = sphi 0, %s185
      %s186 = sphi 0, %s183
      %s187 = sphi 0, %s186
      %s203 = sphi 0, %s187
    $region4: #{tpu_custom_call.1} parent=1 // loop_header_branch
      %24 = sbr.rel (%p22) target = $region8
    $region5: #{tpu_custom_call.1} parent=1 // loop_body
      %s26 = ssub.s32 %s21, 1
      %s27 = ssub.s32 %s21, 2
      %s28 = sadd.s32 %s21, 1
      %s29 = ssub.s32 %s21, %s28
      %p30 = scmp.eq.s32.totalorder %s29, 0
      %s32 = sadd.s32 %s31, 1
      %s33 = scalar_select %p30, %s31, %s32
      %p36 = pneg %p30
      %p37 = scmp.eq.s32.totalorder %s21, 1
      %p38 = por %p36, %p37
      %p39 = scmp.ne.s32.totalorder %s31, %s34
      %p40 = scmp.eq.s32.totalorder %s21, 0
      %p41 = por %p39, %p40
      %p42 = scmp.ne.s32.totalorder %s31, %s34
      %p43 = scmp.eq.s32.totalorder %s26, 1
      %p44 = por %p42, %p43
      %p45 = scmp.ne.s32.totalorder %s34, %s35
      %p46 = scmp.eq.s32.totalorder %s26, 0
      %p47 = por %p45, %p46
      %p48 = scmp.ne.s32.totalorder %s34, %s35
      %p49 = scmp.eq.s32.totalorder %s27, 1
      %p50 = por %p48, %p49
      %p52 = scmp.ne.s32.totalorder %s35, %s51
      %p53 = scmp.eq.s32.totalorder %s27, 0
      %p54 = por %p52, %p53
      %s56 = sadd.s32 %s55, 1
      %p59 = scmp.eq.s32.totalorder %s21, 1
      %p60 = scmp.ne.s32.totalorder %s55, %s57
      %p61 = scmp.eq.s32.totalorder %s21, 0
      %p62 = por %p60, %p61
      %p63 = scmp.ne.s32.totalorder %s55, %s57
      %p64 = scmp.eq.s32.totalorder %s26, 1
      %p65 = por %p63, %p64
      %p66 = scmp.ne.s32.totalorder %s57, %s58
      %p67 = scmp.eq.s32.totalorder %s26, 0
      %p68 = por %p66, %p67
      %p69 = scmp.ne.s32.totalorder %s57, %s58
      %p70 = scmp.eq.s32.totalorder %s27, 1
      %p71 = por %p69, %p70
      %p73 = scmp.ne.s32.totalorder %s58, %s72
      %p74 = scmp.eq.s32.totalorder %s27, 0
      %p75 = por %p73, %p74
      %s77 = sadd.s32 %s76, 1
      %p80 = scmp.eq.s32.totalorder %s21, 1
      %p81 = scmp.ne.s32.totalorder %s76, %s78
      %p82 = scmp.eq.s32.totalorder %s21, 0
      %p83 = por %p81, %p82
      %p84 = scmp.ne.s32.totalorder %s76, %s78
      %p85 = scmp.eq.s32.totalorder %s26, 1
      %p86 = por %p84, %p85
      %p87 = scmp.ne.s32.totalorder %s78, %s79
      %p88 = scmp.eq.s32.totalorder %s26, 0
      %p89 = por %p87, %p88
      %p90 = scmp.ne.s32.totalorder %s78, %s79
      %p91 = scmp.eq.s32.totalorder %s27, 1
      %p92 = por %p90, %p91
      %p94 = scmp.ne.s32.totalorder %s79, %s93
      %p95 = scmp.eq.s32.totalorder %s27, 0
      %p96 = por %p94, %p95
      %s98 = sadd.s32 %s97, 1
      %p101 = scmp.eq.s32.totalorder %s21, 1
      %p102 = scmp.ne.s32.totalorder %s97, %s99
      %p103 = scmp.eq.s32.totalorder %s21, 0
      %p104 = por %p102, %p103
      %p105 = scmp.ne.s32.totalorder %s97, %s99
      %p106 = scmp.eq.s32.totalorder %s26, 1
      %p107 = por %p105, %p106
      %p108 = scmp.ne.s32.totalorder %s99, %s100
      %p109 = scmp.eq.s32.totalorder %s26, 0
      %p110 = por %p108, %p109
      %p111 = scmp.ne.s32.totalorder %s99, %s100
      %p112 = scmp.eq.s32.totalorder %s27, 1
      %p113 = por %p111, %p112
      %p115 = scmp.ne.s32.totalorder %s100, %s114
      %p116 = scmp.eq.s32.totalorder %s27, 0
      %p117 = por %p115, %p116
      %s119 = sadd.s32 %s118, 1
      %p122 = scmp.eq.s32.totalorder %s21, 1
      %p123 = scmp.ne.s32.totalorder %s118, %s120
      %p124 = scmp.eq.s32.totalorder %s21, 0
      %p125 = por %p123, %p124
      %p126 = scmp.ne.s32.totalorder %s118, %s120
      %p127 = scmp.eq.s32.totalorder %s26, 1
      %p128 = por %p126, %p127
      %p129 = scmp.ne.s32.totalorder %s120, %s121
      %p130 = scmp.eq.s32.totalorder %s26, 0
      %p131 = por %p129, %p130
      %p132 = scmp.ne.s32.totalorder %s120, %s121
      %p133 = scmp.eq.s32.totalorder %s27, 1
      %p134 = por %p132, %p133
      %p136 = scmp.ne.s32.totalorder %s121, %s135
      %p137 = scmp.eq.s32.totalorder %s27, 0
      %p138 = por %p136, %p137
      %s140 = sadd.s32 %s139, 1
      %p143 = scmp.eq.s32.totalorder %s21, 1
      %p144 = scmp.ne.s32.totalorder %s139, %s141
      %p145 = scmp.eq.s32.totalorder %s21, 0
      %p146 = por %p144, %p145
      %p147 = scmp.ne.s32.totalorder %s139, %s141
      %p148 = scmp.eq.s32.totalorder %s26, 1
      %p149 = por %p147, %p148
      %p150 = scmp.ne.s32.totalorder %s141, %s142
      %p151 = scmp.eq.s32.totalorder %s26, 0
      %p152 = por %p150, %p151
      %p153 = scmp.ne.s32.totalorder %s141, %s142
      %p154 = scmp.eq.s32.totalorder %s27, 1
      %p155 = por %p153, %p154
      %p157 = scmp.ne.s32.totalorder %s142, %s156
      %p158 = scmp.eq.s32.totalorder %s27, 0
      %p159 = por %p157, %p158
      %s161 = sadd.s32 %s160, 1
      %p164 = scmp.eq.s32.totalorder %s21, 1
      %p165 = scmp.ne.s32.totalorder %s160, %s162
      %p166 = scmp.eq.s32.totalorder %s21, 0
      %p167 = por %p165, %p166
      %p168 = scmp.ne.s32.totalorder %s160, %s162
      %p169 = scmp.eq.s32.totalorder %s26, 1
      %p170 = por %p168, %p169
      %p171 = scmp.ne.s32.totalorder %s162, %s163
      %p172 = scmp.eq.s32.totalorder %s26, 0
      %p173 = por %p171, %p172
      %p174 = scmp.ne.s32.totalorder %s162, %s163
      %p175 = scmp.eq.s32.totalorder %s27, 1
      %p176 = por %p174, %p175
      %p178 = scmp.ne.s32.totalorder %s163, %s177
      %p179 = scmp.eq.s32.totalorder %s27, 0
      %p180 = por %p178, %p179
      %s181 = ssub.s32 %s21, %s28
      %p182 = scmp.eq.s32.totalorder %s181, 0
      %s184 = sadd.s32 %s183, 1
      %s185 = scalar_select %p182, %s183, %s184
      %p188 = pneg %p182
      %p189 = scmp.eq.s32.totalorder %s21, 1
      %p190 = por %p188, %p189
      %p191 = scmp.ne.s32.totalorder %s183, %s186
      %p192 = scmp.eq.s32.totalorder %s21, 0
      %p193 = por %p191, %p192
      %p194 = scmp.ne.s32.totalorder %s183, %s186
      %p195 = scmp.eq.s32.totalorder %s26, 1
      %p196 = por %p194, %p195
      %p197 = scmp.ne.s32.totalorder %s186, %s187
      %p198 = scmp.eq.s32.totalorder %s26, 0
      %p199 = por %p197, %p198
      %p200 = scmp.ne.s32.totalorder %s186, %s187
      %p201 = scmp.eq.s32.totalorder %s27, 1
      %p202 = por %p200, %p201
      %p204 = scmp.ne.s32.totalorder %s187, %s203
      %p205 = scmp.eq.s32.totalorder %s27, 0
      %p206 = por %p204, %p205
      %p207 = scmp.le.s32.totalorder 1, %s21
      %p208 = scmp.lt.s32.totalorder %s21, 3
      %p209 = pnand %p207, %p208
      %p210 = pneg %p209
      // Predicated region
      $region9: #{tpu_custom_call.1} parent=5 // pred_check
        _
      $region10: #{tpu_custom_call.1} parent=5 // pred_check_branch
        %212 = sbr.rel (%p209) target = $region12
      $region11: #{tpu_custom_call.1} parent=5 // pred_region
        %s213 = ssub.s32 %s21, 1
        // Predicated region
        $region13: #{tpu_custom_call.1} parent=11 // pred_check
          %p214 = pneg %p68
        $region14: #{tpu_custom_call.1} parent=11 // pred_check_branch
          %216 = sbr.rel (%p214) target = $region16
        $region15: #{tpu_custom_call.1} parent=11 // pred_region
          %218 = vsyncadd [#allocation6], 0
          %s219 = sshll.u32 %s1, 4
          %s220 = int_to_ptr.hbm [resolvable:$true] %s219
          %s221 = sshll.u32 [#allocation5], 4
          %s222 = int_to_ptr.vmem [resolvable:$true] %s221
          %227 = dma.hbm_to_vmem [thread:$0]  %s220, 4096, %s222, [#allocation6], 256, 256, 16
        $region16: #{tpu_custom_call.1} parent=11 // pred_fallthru
          _
        // Predicated region
        $region17: #{tpu_custom_call.1} parent=11 // pred_check
          %p228 = pneg %p89
        $region18: #{tpu_custom_call.1} parent=11 // pred_check_branch
          %230 = sbr.rel (%p228) target = $region20
        $region19: #{tpu_custom_call.1} parent=11 // pred_region
          %232 = vsyncadd [#allocation6], 0
          %s234 = sshll.u32 %s2, 4
          %s235 = int_to_ptr.hbm [resolvable:$true] %s234
          %s236 = sshll.u32 [#allocation7], 4
          %s237 = int_to_ptr.vmem [resolvable:$true] %s236
          %239 = dma.hbm_to_vmem [thread:$0]  %s235, 32, %s237, [#allocation6]
        $region20: #{tpu_custom_call.1} parent=11 // pred_fallthru
          _
        // Predicated region
        $region21: #{tpu_custom_call.1} parent=11 // pred_check
          %p240 = pneg %p110
        $region22: #{tpu_custom_call.1} parent=11 // pred_check_branch
          %242 = sbr.rel (%p240) target = $region24
        $region23: #{tpu_custom_call.1} parent=11 // pred_region
          %244 = vsyncadd [#allocation9], 0
          %s245 = sshll.u32 %s3, 4
          %s246 = int_to_ptr.hbm [resolvable:$true] %s245
          %s247 = sshll.u32 [#allocation8], 4
          %s248 = int_to_ptr.vmem [resolvable:$true] %s247
          %253 = dma.hbm_to_vmem [thread:$0]  %s246, 8192, %s248, [#allocation9], 256, 256, 16
        $region24: #{tpu_custom_call.1} parent=11 // pred_fallthru
          _
        // Predicated region
        $region25: #{tpu_custom_call.1} parent=11 // pred_check
          %p254 = pneg %p131
        $region26: #{tpu_custom_call.1} parent=11 // pred_check_branch
          %256 = sbr.rel (%p254) target = $region28
        $region27: #{tpu_custom_call.1} parent=11 // pred_region
          _
        $region28: #{tpu_custom_call.1} parent=11 // pred_fallthru
          _
        // Predicated region
        $region29: #{tpu_custom_call.1} parent=11 // pred_check
          %p257 = pneg %p152
        $region30: #{tpu_custom_call.1} parent=11 // pred_check_branch
          %259 = sbr.rel (%p257) target = $region32
        $region31: #{tpu_custom_call.1} parent=11 // pred_region
          %261 = vsyncadd [#allocation9], 0
          %s262 = sshll.u32 %s5, 4
          %s263 = int_to_ptr.hbm [resolvable:$true] %s262
          %s264 = sshll.u32 [#allocation10], 4
          %s265 = int_to_ptr.vmem [resolvable:$true] %s264
          %270 = dma.hbm_to_vmem [thread:$0]  %s263, 4096, %s265, [#allocation9], 128, 128, 8
        $region32: #{tpu_custom_call.1} parent=11 // pred_fallthru
          _
        // Predicated region
        $region33: #{tpu_custom_call.1} parent=11 // pred_check
          %p271 = pneg %p173
        $region34: #{tpu_custom_call.1} parent=11 // pred_check_branch
          %273 = sbr.rel (%p271) target = $region36
        $region35: #{tpu_custom_call.1} parent=11 // pred_region
          _
        $region36: #{tpu_custom_call.1} parent=11 // pred_fallthru
          _
      $region12: #{tpu_custom_call.1} parent=5 // pred_fallthru
        _
      %p274 = scmp.lt.s32.totalorder %s21, 2
      // Predicated region
      $region37: #{tpu_custom_call.1} parent=5 // pred_check
        %p275 = pneg %p274
      $region38: #{tpu_custom_call.1} parent=5 // pred_check_branch
        %277 = sbr.rel (%p275) target = $region40
      $region39: #{tpu_custom_call.1} parent=5 // pred_region
        // Predicated region
        $region41: #{tpu_custom_call.1} parent=39 // pred_check
          %p278 = pneg %p41
        $region42: #{tpu_custom_call.1} parent=39 // pred_check_branch
          %280 = sbr.rel (%p278) target = $region44
        $region43: #{tpu_custom_call.1} parent=39 // pred_region
          %s281 = sand.u32 %s31, 1
          %s282 = scalar_lea.sflag [#allocation3], %s281
          %s283 = sand.u32 %s31, 1
          %s284 = smul.addr %s283, 256
          %s285 = scalar_lea.vmem [#allocation2], %s284
          %s286 = smul.u32 32, %s21
          %288 = vsyncadd %s282, 0
          %s289 = smul.addr %s286, 8
          %s290 = scalar_lea.hbm %s0, %s289
          %s291 = sshll.u32 %s290, 4
          %s292 = int_to_ptr.hbm [resolvable:$true] %s291
          %s293 = sshll.u32 %s285, 4
          %s294 = int_to_ptr.vmem [resolvable:$true] %s293
          %299 = dma.hbm_to_vmem [thread:$0]  %s292, 4096, %s294, %s282, 128, 128, 8
        $region44: #{tpu_custom_call.1} parent=39 // pred_fallthru
          _
      $region40: #{tpu_custom_call.1} parent=5 // pred_fallthru
        _
      %p300 = scmp.le.s32.totalorder 1, %s21
      %p301 = scmp.lt.s32.totalorder %s21, 3
      %p302 = pnand %p300, %p301
      %p303 = pneg %p302
      // Predicated region
      $region45: #{tpu_custom_call.1} parent=5 // pred_check
        _
      $region46: #{tpu_custom_call.1} parent=5 // pred_check_branch
        %305 = sbr.rel (%p302) target = $region48
      $region47: #{tpu_custom_call.1} parent=5 // pred_region
        %s306 = ssub.s32 %s21, 1
        %s307 = sand.u32 %s34, 1
        %s308 = scalar_lea.sflag [#allocation3], %s307
        %s309 = sand.u32 %s34, 1
        %s310 = smul.addr %s309, 256
        %s311 = scalar_lea.vmem [#allocation2], %s310
        // Predicated region
        $region49: #{tpu_custom_call.1} parent=47 // pred_check
          %p312 = pneg %p47
        $region50: #{tpu_custom_call.1} parent=47 // pred_check_branch
          %314 = sbr.rel (%p312) target = $region52
        $region51: #{tpu_custom_call.1} parent=47 // pred_region
          %316 = dma.done %s308, 4096
        $region52: #{tpu_custom_call.1} parent=47 // pred_fallthru
          _
        // Predicated region
        $region53: #{tpu_custom_call.1} parent=47 // pred_check
          %p317 = pneg %p68
        $region54: #{tpu_custom_call.1} parent=47 // pred_check_branch
          %319 = sbr.rel (%p317) target = $region56
        $region55: #{tpu_custom_call.1} parent=47 // pred_region
          %321 = dma.done [#allocation6], 4096
        $region56: #{tpu_custom_call.1} parent=47 // pred_fallthru
          _
        // Predicated region
        $region57: #{tpu_custom_call.1} parent=47 // pred_check
          %p322 = pneg %p89
        $region58: #{tpu_custom_call.1} parent=47 // pred_check_branch
          %324 = sbr.rel (%p322) target = $region60
        $region59: #{tpu_custom_call.1} parent=47 // pred_region
          %326 = dma.done [#allocation6], 32
        $region60: #{tpu_custom_call.1} parent=47 // pred_fallthru
          _
        // Predicated region
        $region61: #{tpu_custom_call.1} parent=47 // pred_check
          %p327 = pneg %p110
        $region62: #{tpu_custom_call.1} parent=47 // pred_check_branch
          %329 = sbr.rel (%p327) target = $region64
        $region63: #{tpu_custom_call.1} parent=47 // pred_region
          %331 = dma.done [#allocation9], 8192
        $region64: #{tpu_custom_call.1} parent=47 // pred_fallthru
          _
        // Predicated region
        $region65: #{tpu_custom_call.1} parent=47 // pred_check
          %p332 = pneg %p152
        $region66: #{tpu_custom_call.1} parent=47 // pred_check_branch
          %334 = sbr.rel (%p332) target = $region68
        $region67: #{tpu_custom_call.1} parent=47 // pred_region
          %336 = dma.done [#allocation9], 4096
        $region68: #{tpu_custom_call.1} parent=47 // pred_fallthru
          _
        %s337 = sand.u32 %s34, 1
        %s338 = scalar_lea.sflag [#allocation3], %s337
        %s339 = sand.u32 %s34, 1
        %s340 = smul.addr %s339, 256
        %s341 = scalar_lea.vmem [#allocation2], %s340
        %p342 = pneg %p47
        %p343 = pneg %p44
        %p344 = pneg %p68
        %p345 = pneg %p65
        %p346 = pneg %p89
        %p347 = pneg %p86
        %p348 = pneg %p110
        %p349 = pneg %p107
        %p350 = pneg %p131
        %p351 = pneg %p128
        %p352 = pneg %p152
        %p353 = pneg %p149
        %p354 = pneg %p173
        %p355 = pneg %p170
        %p356 = pneg %p199
        %p357 = pneg %p196
        %s358 = sand.u32 %s186, 1
        %s359 = scalar_lea.sflag [#allocation4], %s358
        %s360 = sand.u32 %s186, 1
        %s361 = smul.addr %s360, 256
        %s362 = scalar_lea.vmem [#allocation11], %s361
        %s363 = smul.u32 32, %s26
        %s364 = smul.u32 32, %s26
        %v365 = vld [vmem:[%s311] sm:$0xff]
        %v366 = vld [vmem:[%s311 + $0x8] sm:$0xff]
        %v367 = vld [vmem:[%s311 + $0x10] sm:$0xff]
        %v368 = vld [vmem:[%s311 + $0x18] sm:$0xff]
        %v369 = vld [vmem:[%s311 + $0x20] sm:$0xff]
        %v370 = vld [vmem:[%s311 + $0x28] sm:$0xff]
        %v371 = vld [vmem:[%s311 + $0x30] sm:$0xff]
        %v372 = vld [vmem:[%s311 + $0x38] sm:$0xff]
        %v373 = vld [vmem:[%s311 + $0x40] sm:$0xff]
        %v374 = vld [vmem:[%s311 + $0x48] sm:$0xff]
        %v375 = vld [vmem:[%s311 + $0x50] sm:$0xff]
        %v376 = vld [vmem:[%s311 + $0x58] sm:$0xff]
        %v377 = vld [vmem:[%s311 + $0x60] sm:$0xff]
        %v378 = vld [vmem:[%s311 + $0x68] sm:$0xff]
        %v379 = vld [vmem:[%s311 + $0x70] sm:$0xff]
        %v380 = vld [vmem:[%s311 + $0x78] sm:$0xff]
        %v381 = vld [vmem:[%s311 + $0x80] sm:$0xff]
        %v382 = vld [vmem:[%s311 + $0x88] sm:$0xff]
        %v383 = vld [vmem:[%s311 + $0x90] sm:$0xff]
        %v384 = vld [vmem:[%s311 + $0x98] sm:$0xff]
        %v385 = vld [vmem:[%s311 + $0xa0] sm:$0xff]
        %v386 = vld [vmem:[%s311 + $0xa8] sm:$0xff]
        %v387 = vld [vmem:[%s311 + $0xb0] sm:$0xff]
        %v388 = vld [vmem:[%s311 + $0xb8] sm:$0xff]
        %v389 = vld [vmem:[%s311 + $0xc0] sm:$0xff]
        %v390 = vld [vmem:[%s311 + $0xc8] sm:$0xff]
        %v391 = vld [vmem:[%s311 + $0xd0] sm:$0xff]
        %v392 = vld [vmem:[%s311 + $0xd8] sm:$0xff]
        %v393 = vld [vmem:[%s311 + $0xe0] sm:$0xff]
        %v394 = vld [vmem:[%s311 + $0xe8] sm:$0xff]
        %v395 = vld [vmem:[%s311 + $0xf0] sm:$0xff]
        %v396 = vld [vmem:[%s311 + $0xf8] sm:$0xff]
        %v397 = vld [vmem:[#allocation5] sm:$0xff]
        %v398 = vld [vmem:[#allocation5 + $0x8] sm:$0xff]
        %v399 = vld [vmem:[#allocation5 + $0x10] sm:$0xff]
        %v400 = vld [vmem:[#allocation5 + $0x18] sm:$0xff]
        %v401 = vld [vmem:[#allocation5 + $0x20] sm:$0xff]
        %v402 = vld [vmem:[#allocation5 + $0x28] sm:$0xff]
        %v403 = vld [vmem:[#allocation5 + $0x30] sm:$0xff]
        %v404 = vld [vmem:[#allocation5 + $0x38] sm:$0xff]
        %v405 = vld [vmem:[#allocation5 + $0x40] sm:$0xff]
        %v406 = vld [vmem:[#allocation5 + $0x48] sm:$0xff]
        %v407 = vld [vmem:[#allocation5 + $0x50] sm:$0xff]
        %v408 = vld [vmem:[#allocation5 + $0x58] sm:$0xff]
        %v409 = vld [vmem:[#allocation5 + $0x60] sm:$0xff]
        %v410 = vld [vmem:[#allocation5 + $0x68] sm:$0xff]
        %v411 = vld [vmem:[#allocation5 + $0x70] sm:$0xff]
        %v412 = vld [vmem:[#allocation5 + $0x78] sm:$0xff]
        %v413 = vld [vmem:[#allocation5 + $0x80] sm:$0xff]
        %v414 = vld [vmem:[#allocation5 + $0x88] sm:$0xff]
        %v415 = vld [vmem:[#allocation5 + $0x90] sm:$0xff]
        %v416 = vld [vmem:[#allocation5 + $0x98] sm:$0xff]
        %v417 = vld [vmem:[#allocation5 + $0xa0] sm:$0xff]
        %v418 = vld [vmem:[#allocation5 + $0xa8] sm:$0xff]
        %v419 = vld [vmem:[#allocation5 + $0xb0] sm:$0xff]
        %v420 = vld [vmem:[#allocation5 + $0xb8] sm:$0xff]
        %v421 = vld [vmem:[#allocation5 + $0xc0] sm:$0xff]
        %v422 = vld [vmem:[#allocation5 + $0xc8] sm:$0xff]
        %v423 = vld [vmem:[#allocation5 + $0xd0] sm:$0xff]
        %v424 = vld [vmem:[#allocation5 + $0xd8] sm:$0xff]
        %v425 = vld [vmem:[#allocation5 + $0xe0] sm:$0xff]
        %v426 = vld [vmem:[#allocation5 + $0xe8] sm:$0xff]
        %v427 = vld [vmem:[#allocation5 + $0xf0] sm:$0xff]
        %v428 = vld [vmem:[#allocation5 + $0xf8] sm:$0xff]
        %v429 = vld [vmem:[#allocation7] sm:$0x3]
        %v431 = vperm.slane %v429, 0
        %v432 = vperm.slane %v429, 1
        %435 = vmatpush.msra.mxu0 %v427
        %436 = vmatpush.msra.mxu0 %v425
        %437 = vmatpush.msra.mxu0 %v423
        %438 = vmatpush.msra.mxu0 %v421
        %439 = vmatpush.msra.mxu0 %v419
        %440 = vmatpush.msra.mxu0 %v417
        %441 = vmatpush.msra.mxu0 %v415
        %442 = vmatpush.msra.mxu0 %v413
        %443 = vmatpush.msra.mxu0 %v411
        %444 = vmatpush.msra.mxu0 %v409
        %445 = vmatpush.msra.mxu0 %v407
        %446 = vmatpush.msra.mxu0 %v405
        %447 = vmatpush.msra.mxu0 %v403
        %448 = vmatpush.msra.mxu0 %v401
        %449 = vmatpush.msra.mxu0 %v399
        %450 = vmatpush.msra.mxu0 %v397
        %451 = vmatmul.f32.gmra.mxu0 %v365
        %v452 = vpop.f32.mrf.mxu0
        %v453 = vadd.f32 %v431, %v452
        %454 = vmatmul.f32.gmra.mxu0 %v366
        %v455 = vpop.f32.mrf.mxu0
        %v456 = vadd.f32 %v431, %v455
        %457 = vmatmul.f32.gmra.mxu0 %v367
        %v458 = vpop.f32.mrf.mxu0
        %v459 = vadd.f32 %v431, %v458
        %460 = vmatmul.f32.gmra.mxu0 %v368
        %v461 = vpop.f32.mrf.mxu0
        %v462 = vadd.f32 %v431, %v461
        %463 = vmatmul.f32.gmra.mxu0 %v369
        %v464 = vpop.f32.mrf.mxu0
        %v465 = vadd.f32 %v431, %v464
        %466 = vmatmul.f32.gmra.mxu0 %v370
        %v467 = vpop.f32.mrf.mxu0
        %v468 = vadd.f32 %v431, %v467
        %469 = vmatmul.f32.gmra.mxu0 %v371
        %v470 = vpop.f32.mrf.mxu0
        %v471 = vadd.f32 %v431, %v470
        %472 = vmatmul.f32.gmra.mxu0 %v372
        %v473 = vpop.f32.mrf.mxu0
        %v474 = vadd.f32 %v431, %v473
        %475 = vmatmul.f32.gmra.mxu0 %v373
        %v476 = vpop.f32.mrf.mxu0
        %v477 = vadd.f32 %v431, %v476
        %478 = vmatmul.f32.gmra.mxu0 %v374
        %v479 = vpop.f32.mrf.mxu0
        %v480 = vadd.f32 %v431, %v479
        %481 = vmatmul.f32.gmra.mxu0 %v375
        %v482 = vpop.f32.mrf.mxu0
        %v483 = vadd.f32 %v431, %v482
        %484 = vmatmul.f32.gmra.mxu0 %v376
        %v485 = vpop.f32.mrf.mxu0
        %v486 = vadd.f32 %v431, %v485
        %487 = vmatmul.f32.gmra.mxu0 %v377
        %v488 = vpop.f32.mrf.mxu0
        %v489 = vadd.f32 %v431, %v488
        %490 = vmatmul.f32.gmra.mxu0 %v378
        %v491 = vpop.f32.mrf.mxu0
        %v492 = vadd.f32 %v431, %v491
        %493 = vmatmul.f32.gmra.mxu0 %v379
        %v494 = vpop.f32.mrf.mxu0
        %v495 = vadd.f32 %v431, %v494
        %496 = vmatmul.f32.gmra.mxu0 %v380
        %v497 = vpop.f32.mrf.mxu0
        %v498 = vadd.f32 %v431, %v497
        %499 = vmatmul.f32.gmra.mxu0 %v381
        %v500 = vpop.f32.mrf.mxu0
        %v501 = vadd.f32 %v431, %v500
        %502 = vmatmul.f32.gmra.mxu0 %v382
        %v503 = vpop.f32.mrf.mxu0
        %v504 = vadd.f32 %v431, %v503
        %505 = vmatmul.f32.gmra.mxu0 %v383
        %v506 = vpop.f32.mrf.mxu0
        %v507 = vadd.f32 %v431, %v506
        %508 = vmatmul.f32.gmra.mxu0 %v384
        %v509 = vpop.f32.mrf.mxu0
        %v510 = vadd.f32 %v431, %v509
        %511 = vmatmul.f32.gmra.mxu0 %v385
        %v512 = vpop.f32.mrf.mxu0
        %v513 = vadd.f32 %v431, %v512
        %514 = vmatmul.f32.gmra.mxu0 %v386
        %v515 = vpop.f32.mrf.mxu0
        %v516 = vadd.f32 %v431, %v515
        %517 = vmatmul.f32.gmra.mxu0 %v387
        %v518 = vpop.f32.mrf.mxu0
        %v519 = vadd.f32 %v431, %v518
        %520 = vmatmul.f32.gmra.mxu0 %v388
        %v521 = vpop.f32.mrf.mxu0
        %v522 = vadd.f32 %v431, %v521
        %523 = vmatmul.f32.gmra.mxu0 %v389
        %v524 = vpop.f32.mrf.mxu0
        %v525 = vadd.f32 %v431, %v524
        %526 = vmatmul.f32.gmra.mxu0 %v390
        %v527 = vpop.f32.mrf.mxu0
        %v528 = vadd.f32 %v431, %v527
        %529 = vmatmul.f32.gmra.mxu0 %v391
        %v530 = vpop.f32.mrf.mxu0
        %v531 = vadd.f32 %v431, %v530
        %532 = vmatmul.f32.gmra.mxu0 %v392
        %v533 = vpop.f32.mrf.mxu0
        %v534 = vadd.f32 %v431, %v533
        %535 = vmatmul.f32.gmra.mxu0 %v393
        %v536 = vpop.f32.mrf.mxu0
        %v537 = vadd.f32 %v431, %v536
        %538 = vmatmul.f32.gmra.mxu0 %v394
        %v539 = vpop.f32.mrf.mxu0
        %v540 = vadd.f32 %v431, %v539
        %541 = vmatmul.f32.gmra.mxu0 %v395
        %v542 = vpop.f32.mrf.mxu0
        %v543 = vadd.f32 %v431, %v542
        %544 = vmatmul.f32.gmra.mxu0 %v396
        %v545 = vpop.f32.mrf.mxu0
        %v546 = vadd.f32 %v431, %v545
        %547 = vdwg.mxu0
        %548 = vmatpush.msra.mxu0 %v428
        %549 = vmatpush.msra.mxu0 %v426
        %550 = vmatpush.msra.mxu0 %v424
        %551 = vmatpush.msra.mxu0 %v422
        %552 = vmatpush.msra.mxu0 %v420
        %553 = vmatpush.msra.mxu0 %v418
        %554 = vmatpush.msra.mxu0 %v416
        %555 = vmatpush.msra.mxu0 %v414
        %556 = vmatpush.msra.mxu0 %v412
        %557 = vmatpush.msra.mxu0 %v410
        %558 = vmatpush.msra.mxu0 %v408
        %559 = vmatpush.msra.mxu0 %v406
        %560 = vmatpush.msra.mxu0 %v404
        %561 = vmatpush.msra.mxu0 %v402
        %562 = vmatpush.msra.mxu0 %v400
        %563 = vmatpush.msra.mxu0 %v398
        %564 = vmatmul.f32.gmra.mxu0 %v365
        %v565 = vpop.f32.mrf.mxu0
        %v566 = vadd.f32 %v432, %v565
        %567 = vmatmul.f32.gmra.mxu0 %v366
        %v568 = vpop.f32.mrf.mxu0
        %v569 = vadd.f32 %v432, %v568
        %570 = vmatmul.f32.gmra.mxu0 %v367
        %v571 = vpop.f32.mrf.mxu0
        %v572 = vadd.f32 %v432, %v571
        %573 = vmatmul.f32.gmra.mxu0 %v368
        %v574 = vpop.f32.mrf.mxu0
        %v575 = vadd.f32 %v432, %v574
        %576 = vmatmul.f32.gmra.mxu0 %v369
        %v577 = vpop.f32.mrf.mxu0
        %v578 = vadd.f32 %v432, %v577
        %579 = vmatmul.f32.gmra.mxu0 %v370
        %v580 = vpop.f32.mrf.mxu0
        %v581 = vadd.f32 %v432, %v580
        %582 = vmatmul.f32.gmra.mxu0 %v371
        %v583 = vpop.f32.mrf.mxu0
        %v584 = vadd.f32 %v432, %v583
        %585 = vmatmul.f32.gmra.mxu0 %v372
        %v586 = vpop.f32.mrf.mxu0
        %v587 = vadd.f32 %v432, %v586
        %588 = vmatmul.f32.gmra.mxu0 %v373
        %v589 = vpop.f32.mrf.mxu0
        %v590 = vadd.f32 %v432, %v589
        %591 = vmatmul.f32.gmra.mxu0 %v374
        %v592 = vpop.f32.mrf.mxu0
        %v593 = vadd.f32 %v432, %v592
        %594 = vmatmul.f32.gmra.mxu0 %v375
        %v595 = vpop.f32.mrf.mxu0
        %v596 = vadd.f32 %v432, %v595
        %597 = vmatmul.f32.gmra.mxu0 %v376
        %v598 = vpop.f32.mrf.mxu0
        %v599 = vadd.f32 %v432, %v598
        %600 = vmatmul.f32.gmra.mxu0 %v377
        %v601 = vpop.f32.mrf.mxu0
        %v602 = vadd.f32 %v432, %v601
        %603 = vmatmul.f32.gmra.mxu0 %v378
        %v604 = vpop.f32.mrf.mxu0
        %v605 = vadd.f32 %v432, %v604
        %606 = vmatmul.f32.gmra.mxu0 %v379
        %v607 = vpop.f32.mrf.mxu0
        %v608 = vadd.f32 %v432, %v607
        %609 = vmatmul.f32.gmra.mxu0 %v380
        %v610 = vpop.f32.mrf.mxu0
        %v611 = vadd.f32 %v432, %v610
        %612 = vmatmul.f32.gmra.mxu0 %v381
        %v613 = vpop.f32.mrf.mxu0
        %v614 = vadd.f32 %v432, %v613
        %615 = vmatmul.f32.gmra.mxu0 %v382
        %v616 = vpop.f32.mrf.mxu0
        %v617 = vadd.f32 %v432, %v616
        %618 = vmatmul.f32.gmra.mxu0 %v383
        %v619 = vpop.f32.mrf.mxu0
        %v620 = vadd.f32 %v432, %v619
        %621 = vmatmul.f32.gmra.mxu0 %v384
        %v622 = vpop.f32.mrf.mxu0
        %v623 = vadd.f32 %v432, %v622
        %624 = vmatmul.f32.gmra.mxu0 %v385
        %v625 = vpop.f32.mrf.mxu0
        %v626 = vadd.f32 %v432, %v625
        %627 = vmatmul.f32.gmra.mxu0 %v386
        %v628 = vpop.f32.mrf.mxu0
        %v629 = vadd.f32 %v432, %v628
        %630 = vmatmul.f32.gmra.mxu0 %v387
        %v631 = vpop.f32.mrf.mxu0
        %v632 = vadd.f32 %v432, %v631
        %633 = vmatmul.f32.gmra.mxu0 %v388
        %v634 = vpop.f32.mrf.mxu0
        %v635 = vadd.f32 %v432, %v634
        %636 = vmatmul.f32.gmra.mxu0 %v389
        %v637 = vpop.f32.mrf.mxu0
        %v638 = vadd.f32 %v432, %v637
        %639 = vmatmul.f32.gmra.mxu0 %v390
        %v640 = vpop.f32.mrf.mxu0
        %v641 = vadd.f32 %v432, %v640
        %642 = vmatmul.f32.gmra.mxu0 %v391
        %v643 = vpop.f32.mrf.mxu0
        %v644 = vadd.f32 %v432, %v643
        %645 = vmatmul.f32.gmra.mxu0 %v392
        %v646 = vpop.f32.mrf.mxu0
        %v647 = vadd.f32 %v432, %v646
        %648 = vmatmul.f32.gmra.mxu0 %v393
        %v649 = vpop.f32.mrf.mxu0
        %v650 = vadd.f32 %v432, %v649
        %651 = vmatmul.f32.gmra.mxu0 %v394
        %v652 = vpop.f32.mrf.mxu0
        %v653 = vadd.f32 %v432, %v652
        %654 = vmatmul.f32.gmra.mxu0 %v395
        %v655 = vpop.f32.mrf.mxu0
        %v656 = vadd.f32 %v432, %v655
        %657 = vmatmul.f32.gmra.mxu0 %v396
        %v658 = vpop.f32.mrf.mxu0
        %v659 = vadd.f32 %v432, %v658
        %660 = vdwg.mxu0
        %vm661 = vcmp.ge.f32.partialorder %v453, 0.0
        %vm662 = vcmp.ge.f32.partialorder %v566, 0.0
        %vm663 = vcmp.ge.f32.partialorder %v456, 0.0
        %vm664 = vcmp.ge.f32.partialorder %v569, 0.0
        %vm665 = vcmp.ge.f32.partialorder %v459, 0.0
        %vm666 = vcmp.ge.f32.partialorder %v572, 0.0
        %vm667 = vcmp.ge.f32.partialorder %v462, 0.0
        %vm668 = vcmp.ge.f32.partialorder %v575, 0.0
        %vm669 = vcmp.ge.f32.partialorder %v465, 0.0
        %vm670 = vcmp.ge.f32.partialorder %v578, 0.0
        %vm671 = vcmp.ge.f32.partialorder %v468, 0.0
        %vm672 = vcmp.ge.f32.partialorder %v581, 0.0
        %vm673 = vcmp.ge.f32.partialorder %v471, 0.0
        %vm674 = vcmp.ge.f32.partialorder %v584, 0.0
        %vm675 = vcmp.ge.f32.partialorder %v474, 0.0
        %vm676 = vcmp.ge.f32.partialorder %v587, 0.0
        %vm677 = vcmp.ge.f32.partialorder %v477, 0.0
        %vm678 = vcmp.ge.f32.partialorder %v590, 0.0
        %vm679 = vcmp.ge.f32.partialorder %v480, 0.0
        %vm680 = vcmp.ge.f32.partialorder %v593, 0.0
        %vm681 = vcmp.ge.f32.partialorder %v483, 0.0
        %vm682 = vcmp.ge.f32.partialorder %v596, 0.0
        %vm683 = vcmp.ge.f32.partialorder %v486, 0.0
        %vm684 = vcmp.ge.f32.partialorder %v599, 0.0
        %vm685 = vcmp.ge.f32.partialorder %v489, 0.0
        %vm686 = vcmp.ge.f32.partialorder %v602, 0.0
        %vm687 = vcmp.ge.f32.partialorder %v492, 0.0
        %vm688 = vcmp.ge.f32.partialorder %v605, 0.0
        %vm689 = vcmp.ge.f32.partialorder %v495, 0.0
        %vm690 = vcmp.ge.f32.partialorder %v608, 0.0
        %vm691 = vcmp.ge.f32.partialorder %v498, 0.0
        %vm692 = vcmp.ge.f32.partialorder %v611, 0.0
        %vm693 = vcmp.ge.f32.partialorder %v501, 0.0
        %vm694 = vcmp.ge.f32.partialorder %v614, 0.0
        %vm695 = vcmp.ge.f32.partialorder %v504, 0.0
        %vm696 = vcmp.ge.f32.partialorder %v617, 0.0
        %vm697 = vcmp.ge.f32.partialorder %v507, 0.0
        %vm698 = vcmp.ge.f32.partialorder %v620, 0.0
        %vm699 = vcmp.ge.f32.partialorder %v510, 0.0
        %vm700 = vcmp.ge.f32.partialorder %v623, 0.0
        %vm701 = vcmp.ge.f32.partialorder %v513, 0.0
        %vm702 = vcmp.ge.f32.partialorder %v626, 0.0
        %vm703 = vcmp.ge.f32.partialorder %v516, 0.0
        %vm704 = vcmp.ge.f32.partialorder %v629, 0.0
        %vm705 = vcmp.ge.f32.partialorder %v519, 0.0
        %vm706 = vcmp.ge.f32.partialorder %v632, 0.0
        %vm707 = vcmp.ge.f32.partialorder %v522, 0.0
        %vm708 = vcmp.ge.f32.partialorder %v635, 0.0
        %vm709 = vcmp.ge.f32.partialorder %v525, 0.0
        %vm710 = vcmp.ge.f32.partialorder %v638, 0.0
        %vm711 = vcmp.ge.f32.partialorder %v528, 0.0
        %vm712 = vcmp.ge.f32.partialorder %v641, 0.0
        %vm713 = vcmp.ge.f32.partialorder %v531, 0.0
        %vm714 = vcmp.ge.f32.partialorder %v644, 0.0
        %vm715 = vcmp.ge.f32.partialorder %v534, 0.0
        %vm716 = vcmp.ge.f32.partialorder %v647, 0.0
        %vm717 = vcmp.ge.f32.partialorder %v537, 0.0
        %vm718 = vcmp.ge.f32.partialorder %v650, 0.0
        %vm719 = vcmp.ge.f32.partialorder %v540, 0.0
        %vm720 = vcmp.ge.f32.partialorder %v653, 0.0
        %vm721 = vcmp.ge.f32.partialorder %v543, 0.0
        %vm722 = vcmp.ge.f32.partialorder %v656, 0.0
        %vm723 = vcmp.ge.f32.partialorder %v546, 0.0
        %vm724 = vcmp.ge.f32.partialorder %v659, 0.0
        %v725 = vmul.f32 %v453, 0.2
        %v726 = vmul.f32 %v566, 0.2
        %v727 = vmul.f32 %v456, 0.2
        %v728 = vmul.f32 %v569, 0.2
        %v729 = vmul.f32 %v459, 0.2
        %v730 = vmul.f32 %v572, 0.2
        %v731 = vmul.f32 %v462, 0.2
        %v732 = vmul.f32 %v575, 0.2
        %v733 = vmul.f32 %v465, 0.2
        %v734 = vmul.f32 %v578, 0.2
        %v735 = vmul.f32 %v468, 0.2
        %v736 = vmul.f32 %v581, 0.2
        %v737 = vmul.f32 %v471, 0.2
        %v738 = vmul.f32 %v584, 0.2
        %v739 = vmul.f32 %v474, 0.2
        %v740 = vmul.f32 %v587, 0.2
        %v741 = vmul.f32 %v477, 0.2
        %v742 = vmul.f32 %v590, 0.2
        %v743 = vmul.f32 %v480, 0.2
        %v744 = vmul.f32 %v593, 0.2
        %v745 = vmul.f32 %v483, 0.2
        %v746 = vmul.f32 %v596, 0.2
        %v747 = vmul.f32 %v486, 0.2
        %v748 = vmul.f32 %v599, 0.2
        %v749 = vmul.f32 %v489, 0.2
        %v750 = vmul.f32 %v602, 0.2
        %v751 = vmul.f32 %v492, 0.2
        %v752 = vmul.f32 %v605, 0.2
        %v753 = vmul.f32 %v495, 0.2
        %v754 = vmul.f32 %v608, 0.2
        %v755 = vmul.f32 %v498, 0.2
        %v756 = vmul.f32 %v611, 0.2
        %v757 = vmul.f32 %v501, 0.2
        %v758 = vmul.f32 %v614, 0.2
        %v759 = vmul.f32 %v504, 0.2
        %v760 = vmul.f32 %v617, 0.2
        %v761 = vmul.f32 %v507, 0.2
        %v762 = vmul.f32 %v620, 0.2
        %v763 = vmul.f32 %v510, 0.2
        %v764 = vmul.f32 %v623, 0.2
        %v765 = vmul.f32 %v513, 0.2
        %v766 = vmul.f32 %v626, 0.2
        %v767 = vmul.f32 %v516, 0.2
        %v768 = vmul.f32 %v629, 0.2
        %v769 = vmul.f32 %v519, 0.2
        %v770 = vmul.f32 %v632, 0.2
        %v771 = vmul.f32 %v522, 0.2
        %v772 = vmul.f32 %v635, 0.2
        %v773 = vmul.f32 %v525, 0.2
        %v774 = vmul.f32 %v638, 0.2
        %v775 = vmul.f32 %v528, 0.2
        %v776 = vmul.f32 %v641, 0.2
        %v777 = vmul.f32 %v531, 0.2
        %v778 = vmul.f32 %v644, 0.2
        %v779 = vmul.f32 %v534, 0.2
        %v780 = vmul.f32 %v647, 0.2
        %v781 = vmul.f32 %v537, 0.2
        %v782 = vmul.f32 %v650, 0.2
        %v783 = vmul.f32 %v540, 0.2
        %v784 = vmul.f32 %v653, 0.2
        %v785 = vmul.f32 %v543, 0.2
        %v786 = vmul.f32 %v656, 0.2
        %v787 = vmul.f32 %v546, 0.2
        %v788 = vmul.f32 %v659, 0.2
        %v789 = vsel %vm661, %v453, %v725
        %v790 = vsel %vm662, %v566, %v726
        %v791 = vsel %vm663, %v456, %v727
        %v792 = vsel %vm664, %v569, %v728
        %v793 = vsel %vm665, %v459, %v729
        %v794 = vsel %vm666, %v572, %v730
        %v795 = vsel %vm667, %v462, %v731
        %v796 = vsel %vm668, %v575, %v732
        %v797 = vsel %vm669, %v465, %v733
        %v798 = vsel %vm670, %v578, %v734
        %v799 = vsel %vm671, %v468, %v735
        %v800 = vsel %vm672, %v581, %v736
        %v801 = vsel %vm673, %v471, %v737
        %v802 = vsel %vm674, %v584, %v738
        %v803 = vsel %vm675, %v474, %v739
        %v804 = vsel %vm676, %v587, %v740
        %v805 = vsel %vm677, %v477, %v741
        %v806 = vsel %vm678, %v590, %v742
        %v807 = vsel %vm679, %v480, %v743
        %v808 = vsel %vm680, %v593, %v744
        %v809 = vsel %vm681, %v483, %v745
        %v810 = vsel %vm682, %v596, %v746
        %v811 = vsel %vm683, %v486, %v747
        %v812 = vsel %vm684, %v599, %v748
        %v813 = vsel %vm685, %v489, %v749
        %v814 = vsel %vm686, %v602, %v750
        %v815 = vsel %vm687, %v492, %v751
        %v816 = vsel %vm688, %v605, %v752
        %v817 = vsel %vm689, %v495, %v753
        %v818 = vsel %vm690, %v608, %v754
        %v819 = vsel %vm691, %v498, %v755
        %v820 = vsel %vm692, %v611, %v756
        %v821 = vsel %vm693, %v501, %v757
        %v822 = vsel %vm694, %v614, %v758
        %v823 = vsel %vm695, %v504, %v759
        %v824 = vsel %vm696, %v617, %v760
        %v825 = vsel %vm697, %v507, %v761
        %v826 = vsel %vm698, %v620, %v762
        %v827 = vsel %vm699, %v510, %v763
        %v828 = vsel %vm700, %v623, %v764
        %v829 = vsel %vm701, %v513, %v765
        %v830 = vsel %vm702, %v626, %v766
        %v831 = vsel %vm703, %v516, %v767
        %v832 = vsel %vm704, %v629, %v768
        %v833 = vsel %vm705, %v519, %v769
        %v834 = vsel %vm706, %v632, %v770
        %v835 = vsel %vm707, %v522, %v771
        %v836 = vsel %vm708, %v635, %v772
        %v837 = vsel %vm709, %v525, %v773
        %v838 = vsel %vm710, %v638, %v774
        %v839 = vsel %vm711, %v528, %v775
        %v840 = vsel %vm712, %v641, %v776
        %v841 = vsel %vm713, %v531, %v777
        %v842 = vsel %vm714, %v644, %v778
        %v843 = vsel %vm715, %v534, %v779
        %v844 = vsel %vm716, %v647, %v780
        %v845 = vsel %vm717, %v537, %v781
        %v846 = vsel %vm718, %v650, %v782
        %v847 = vsel %vm719, %v540, %v783
        %v848 = vsel %vm720, %v653, %v784
        %v849 = vsel %vm721, %v543, %v785
        %v850 = vsel %vm722, %v656, %v786
        %v851 = vsel %vm723, %v546, %v787
        %v852 = vsel %vm724, %v659, %v788
        %v853 = vld [vmem:[#allocation8] sm:$0xff]
        %v854 = vld [vmem:[#allocation8 + $0x8] sm:$0xff]
        %v855 = vld [vmem:[#allocation8 + $0x10] sm:$0xff]
        %v856 = vld [vmem:[#allocation8 + $0x18] sm:$0xff]
        %v857 = vld [vmem:[#allocation8 + $0x20] sm:$0xff]
        %v858 = vld [vmem:[#allocation8 + $0x28] sm:$0xff]
        %v859 = vld [vmem:[#allocation8 + $0x30] sm:$0xff]
        %v860 = vld [vmem:[#allocation8 + $0x38] sm:$0xff]
        %v861 = vld [vmem:[#allocation8 + $0x40] sm:$0xff]
        %v862 = vld [vmem:[#allocation8 + $0x48] sm:$0xff]
        %v863 = vld [vmem:[#allocation8 + $0x50] sm:$0xff]
        %v864 = vld [vmem:[#allocation8 + $0x58] sm:$0xff]
        %v865 = vld [vmem:[#allocation8 + $0x60] sm:$0xff]
        %v866 = vld [vmem:[#allocation8 + $0x68] sm:$0xff]
        %v867 = vld [vmem:[#allocation8 + $0x70] sm:$0xff]
        %v868 = vld [vmem:[#allocation8 + $0x78] sm:$0xff]
        %v869 = vld [vmem:[#allocation8 + $0x80] sm:$0xff]
        %v870 = vld [vmem:[#allocation8 + $0x88] sm:$0xff]
        %v871 = vld [vmem:[#allocation8 + $0x90] sm:$0xff]
        %v872 = vld [vmem:[#allocation8 + $0x98] sm:$0xff]
        %v873 = vld [vmem:[#allocation8 + $0xa0] sm:$0xff]
        %v874 = vld [vmem:[#allocation8 + $0xa8] sm:$0xff]
        %v875 = vld [vmem:[#allocation8 + $0xb0] sm:$0xff]
        %v876 = vld [vmem:[#allocation8 + $0xb8] sm:$0xff]
        %v877 = vld [vmem:[#allocation8 + $0xc0] sm:$0xff]
        %v878 = vld [vmem:[#allocation8 + $0xc8] sm:$0xff]
        %v879 = vld [vmem:[#allocation8 + $0xd0] sm:$0xff]
        %v880 = vld [vmem:[#allocation8 + $0xd8] sm:$0xff]
        %v881 = vld [vmem:[#allocation8 + $0xe0] sm:$0xff]
        %v882 = vld [vmem:[#allocation8 + $0xe8] sm:$0xff]
        %v883 = vld [vmem:[#allocation8 + $0xf0] sm:$0xff]
        %v884 = vld [vmem:[#allocation8 + $0xf8] sm:$0xff]
        %v885 = vld [vmem:[#allocation8 + $0x100] sm:$0xff]
        %v886 = vld [vmem:[#allocation8 + $0x108] sm:$0xff]
        %v887 = vld [vmem:[#allocation8 + $0x110] sm:$0xff]
        %v888 = vld [vmem:[#allocation8 + $0x118] sm:$0xff]
        %v889 = vld [vmem:[#allocation8 + $0x120] sm:$0xff]
        %v890 = vld [vmem:[#allocation8 + $0x128] sm:$0xff]
        %v891 = vld [vmem:[#allocation8 + $0x130] sm:$0xff]
        %v892 = vld [vmem:[#allocation8 + $0x138] sm:$0xff]
        %v893 = vld [vmem:[#allocation8 + $0x140] sm:$0xff]
        %v894 = vld [vmem:[#allocation8 + $0x148] sm:$0xff]
        %v895 = vld [vmem:[#allocation8 + $0x150] sm:$0xff]
        %v896 = vld [vmem:[#allocation8 + $0x158] sm:$0xff]
        %v897 = vld [vmem:[#allocation8 + $0x160] sm:$0xff]
        %v898 = vld [vmem:[#allocation8 + $0x168] sm:$0xff]
        %v899 = vld [vmem:[#allocation8 + $0x170] sm:$0xff]
        %v900 = vld [vmem:[#allocation8 + $0x178] sm:$0xff]
        %v901 = vld [vmem:[#allocation8 + $0x180] sm:$0xff]
        %v902 = vld [vmem:[#allocation8 + $0x188] sm:$0xff]
        %v903 = vld [vmem:[#allocation8 + $0x190] sm:$0xff]
        %v904 = vld [vmem:[#allocation8 + $0x198] sm:$0xff]
        %v905 = vld [vmem:[#allocation8 + $0x1a0] sm:$0xff]
        %v906 = vld [vmem:[#allocation8 + $0x1a8] sm:$0xff]
        %v907 = vld [vmem:[#allocation8 + $0x1b0] sm:$0xff]
        %v908 = vld [vmem:[#allocation8 + $0x1b8] sm:$0xff]
        %v909 = vld [vmem:[#allocation8 + $0x1c0] sm:$0xff]
        %v910 = vld [vmem:[#allocation8 + $0x1c8] sm:$0xff]
        %v911 = vld [vmem:[#allocation8 + $0x1d0] sm:$0xff]
        %v912 = vld [vmem:[#allocation8 + $0x1d8] sm:$0xff]
        %v913 = vld [vmem:[#allocation8 + $0x1e0] sm:$0xff]
        %v914 = vld [vmem:[#allocation8 + $0x1e8] sm:$0xff]
        %v915 = vld [vmem:[#allocation8 + $0x1f0] sm:$0xff]
        %v916 = vld [vmem:[#allocation8 + $0x1f8] sm:$0xff]
        %v917 = vld [vmem:[%s4] sm:$0x3]
        %v919 = vperm.slane %v917, 0
        %v920 = vperm.slane %v917, 1
        %923 = vmatpush.msra.mxu0 %v883
        %924 = vmatpush.msra.mxu0 %v881
        %925 = vmatpush.msra.mxu0 %v879
        %926 = vmatpush.msra.mxu0 %v877
        %927 = vmatpush.msra.mxu0 %v875
        %928 = vmatpush.msra.mxu0 %v873
        %929 = vmatpush.msra.mxu0 %v871
        %930 = vmatpush.msra.mxu0 %v869
        %931 = vmatpush.msra.mxu0 %v867
        %932 = vmatpush.msra.mxu0 %v865
        %933 = vmatpush.msra.mxu0 %v863
        %934 = vmatpush.msra.mxu0 %v861
        %935 = vmatpush.msra.mxu0 %v859
        %936 = vmatpush.msra.mxu0 %v857
        %937 = vmatpush.msra.mxu0 %v855
        %938 = vmatpush.msra.mxu0 %v853
        %939 = vmatmul.f32.gmra.mxu0 %v789
        %v940 = vpop.f32.mrf.mxu0
        %v941 = vadd.f32 %v919, %v940
        %942 = vmatmul.f32.gmra.mxu0 %v791
        %v943 = vpop.f32.mrf.mxu0
        %v944 = vadd.f32 %v919, %v943
        %945 = vmatmul.f32.gmra.mxu0 %v793
        %v946 = vpop.f32.mrf.mxu0
        %v947 = vadd.f32 %v919, %v946
        %948 = vmatmul.f32.gmra.mxu0 %v795
        %v949 = vpop.f32.mrf.mxu0
        %v950 = vadd.f32 %v919, %v949
        %951 = vmatmul.f32.gmra.mxu0 %v797
        %v952 = vpop.f32.mrf.mxu0
        %v953 = vadd.f32 %v919, %v952
        %954 = vmatmul.f32.gmra.mxu0 %v799
        %v955 = vpop.f32.mrf.mxu0
        %v956 = vadd.f32 %v919, %v955
        %957 = vmatmul.f32.gmra.mxu0 %v801
        %v958 = vpop.f32.mrf.mxu0
        %v959 = vadd.f32 %v919, %v958
        %960 = vmatmul.f32.gmra.mxu0 %v803
        %v961 = vpop.f32.mrf.mxu0
        %v962 = vadd.f32 %v919, %v961
        %963 = vmatmul.f32.gmra.mxu0 %v805
        %v964 = vpop.f32.mrf.mxu0
        %v965 = vadd.f32 %v919, %v964
        %966 = vmatmul.f32.gmra.mxu0 %v807
        %v967 = vpop.f32.mrf.mxu0
        %v968 = vadd.f32 %v919, %v967
        %969 = vmatmul.f32.gmra.mxu0 %v809
        %v970 = vpop.f32.mrf.mxu0
        %v971 = vadd.f32 %v919, %v970
        %972 = vmatmul.f32.gmra.mxu0 %v811
        %v973 = vpop.f32.mrf.mxu0
        %v974 = vadd.f32 %v919, %v973
        %975 = vmatmul.f32.gmra.mxu0 %v813
        %v976 = vpop.f32.mrf.mxu0
        %v977 = vadd.f32 %v919, %v976
        %978 = vmatmul.f32.gmra.mxu0 %v815
        %v979 = vpop.f32.mrf.mxu0
        %v980 = vadd.f32 %v919, %v979
        %981 = vmatmul.f32.gmra.mxu0 %v817
        %v982 = vpop.f32.mrf.mxu0
        %v983 = vadd.f32 %v919, %v982
        %984 = vmatmul.f32.gmra.mxu0 %v819
        %v985 = vpop.f32.mrf.mxu0
        %v986 = vadd.f32 %v919, %v985
        %987 = vmatmul.f32.gmra.mxu0 %v821
        %v988 = vpop.f32.mrf.mxu0
        %v989 = vadd.f32 %v919, %v988
        %990 = vmatmul.f32.gmra.mxu0 %v823
        %v991 = vpop.f32.mrf.mxu0
        %v992 = vadd.f32 %v919, %v991
        %993 = vmatmul.f32.gmra.mxu0 %v825
        %v994 = vpop.f32.mrf.mxu0
        %v995 = vadd.f32 %v919, %v994
        %996 = vmatmul.f32.gmra.mxu0 %v827
        %v997 = vpop.f32.mrf.mxu0
        %v998 = vadd.f32 %v919, %v997
        %999 = vmatmul.f32.gmra.mxu0 %v829
        %v1000 = vpop.f32.mrf.mxu0
        %v1001 = vadd.f32 %v919, %v1000
        %1002 = vmatmul.f32.gmra.mxu0 %v831
        %v1003 = vpop.f32.mrf.mxu0
        %v1004 = vadd.f32 %v919, %v1003
        %1005 = vmatmul.f32.gmra.mxu0 %v833
        %v1006 = vpop.f32.mrf.mxu0
        %v1007 = vadd.f32 %v919, %v1006
        %1008 = vmatmul.f32.gmra.mxu0 %v835
        %v1009 = vpop.f32.mrf.mxu0
        %v1010 = vadd.f32 %v919, %v1009
        %1011 = vmatmul.f32.gmra.mxu0 %v837
        %v1012 = vpop.f32.mrf.mxu0
        %v1013 = vadd.f32 %v919, %v1012
        %1014 = vmatmul.f32.gmra.mxu0 %v839
        %v1015 = vpop.f32.mrf.mxu0
        %v1016 = vadd.f32 %v919, %v1015
        %1017 = vmatmul.f32.gmra.mxu0 %v841
        %v1018 = vpop.f32.mrf.mxu0
        %v1019 = vadd.f32 %v919, %v1018
        %1020 = vmatmul.f32.gmra.mxu0 %v843
        %v1021 = vpop.f32.mrf.mxu0
        %v1022 = vadd.f32 %v919, %v1021
        %1023 = vmatmul.f32.gmra.mxu0 %v845
        %v1024 = vpop.f32.mrf.mxu0
        %v1025 = vadd.f32 %v919, %v1024
        %1026 = vmatmul.f32.gmra.mxu0 %v847
        %v1027 = vpop.f32.mrf.mxu0
        %v1028 = vadd.f32 %v919, %v1027
        %1029 = vmatmul.f32.gmra.mxu0 %v849
        %v1030 = vpop.f32.mrf.mxu0
        %v1031 = vadd.f32 %v919, %v1030
        %1032 = vmatmul.f32.gmra.mxu0 %v851
        %v1033 = vpop.f32.mrf.mxu0
        %v1034 = vadd.f32 %v919, %v1033
        %1035 = vdwg.mxu0
        %1036 = vmatpush.msra.mxu0 %v915
        %1037 = vmatpush.msra.mxu0 %v913
        %1038 = vmatpush.msra.mxu0 %v911
        %1039 = vmatpush.msra.mxu0 %v909
        %1040 = vmatpush.msra.mxu0 %v907
        %1041 = vmatpush.msra.mxu0 %v905
        %1042 = vmatpush.msra.mxu0 %v903
        %1043 = vmatpush.msra.mxu0 %v901
        %1044 = vmatpush.msra.mxu0 %v899
        %1045 = vmatpush.msra.mxu0 %v897
        %1046 = vmatpush.msra.mxu0 %v895
        %1047 = vmatpush.msra.mxu0 %v893
        %1048 = vmatpush.msra.mxu0 %v891
        %1049 = vmatpush.msra.mxu0 %v889
        %1050 = vmatpush.msra.mxu0 %v887
        %1051 = vmatpush.msra.mxu0 %v885
        %1052 = vmatmul.f32.gmra.mxu0 %v790
        %v1053 = vpop.f32.mrf.mxu0
        %v1054 = vadd.f32 %v941, %v1053
        %1055 = vmatmul.f32.gmra.mxu0 %v792
        %v1056 = vpop.f32.mrf.mxu0
        %v1057 = vadd.f32 %v944, %v1056
        %1058 = vmatmul.f32.gmra.mxu0 %v794
        %v1059 = vpop.f32.mrf.mxu0
        %v1060 = vadd.f32 %v947, %v1059
        %1061 = vmatmul.f32.gmra.mxu0 %v796
        %v1062 = vpop.f32.mrf.mxu0
        %v1063 = vadd.f32 %v950, %v1062
        %1064 = vmatmul.f32.gmra.mxu0 %v798
        %v1065 = vpop.f32.mrf.mxu0
        %v1066 = vadd.f32 %v953, %v1065
        %1067 = vmatmul.f32.gmra.mxu0 %v800
        %v1068 = vpop.f32.mrf.mxu0
        %v1069 = vadd.f32 %v956, %v1068
        %1070 = vmatmul.f32.gmra.mxu0 %v802
        %v1071 = vpop.f32.mrf.mxu0
        %v1072 = vadd.f32 %v959, %v1071
        %1073 = vmatmul.f32.gmra.mxu0 %v804
        %v1074 = vpop.f32.mrf.mxu0
        %v1075 = vadd.f32 %v962, %v1074
        %1076 = vmatmul.f32.gmra.mxu0 %v806
        %v1077 = vpop.f32.mrf.mxu0
        %v1078 = vadd.f32 %v965, %v1077
        %1079 = vmatmul.f32.gmra.mxu0 %v808
        %v1080 = vpop.f32.mrf.mxu0
        %v1081 = vadd.f32 %v968, %v1080
        %1082 = vmatmul.f32.gmra.mxu0 %v810
        %v1083 = vpop.f32.mrf.mxu0
        %v1084 = vadd.f32 %v971, %v1083
        %1085 = vmatmul.f32.gmra.mxu0 %v812
        %v1086 = vpop.f32.mrf.mxu0
        %v1087 = vadd.f32 %v974, %v1086
        %1088 = vmatmul.f32.gmra.mxu0 %v814
        %v1089 = vpop.f32.mrf.mxu0
        %v1090 = vadd.f32 %v977, %v1089
        %1091 = vmatmul.f32.gmra.mxu0 %v816
        %v1092 = vpop.f32.mrf.mxu0
        %v1093 = vadd.f32 %v980, %v1092
        %1094 = vmatmul.f32.gmra.mxu0 %v818
        %v1095 = vpop.f32.mrf.mxu0
        %v1096 = vadd.f32 %v983, %v1095
        %1097 = vmatmul.f32.gmra.mxu0 %v820
        %v1098 = vpop.f32.mrf.mxu0
        %v1099 = vadd.f32 %v986, %v1098
        %1100 = vmatmul.f32.gmra.mxu0 %v822
        %v1101 = vpop.f32.mrf.mxu0
        %v1102 = vadd.f32 %v989, %v1101
        %1103 = vmatmul.f32.gmra.mxu0 %v824
        %v1104 = vpop.f32.mrf.mxu0
        %v1105 = vadd.f32 %v992, %v1104
        %1106 = vmatmul.f32.gmra.mxu0 %v826
        %v1107 = vpop.f32.mrf.mxu0
        %v1108 = vadd.f32 %v995, %v1107
        %1109 = vmatmul.f32.gmra.mxu0 %v828
        %v1110 = vpop.f32.mrf.mxu0
        %v1111 = vadd.f32 %v998, %v1110
        %1112 = vmatmul.f32.gmra.mxu0 %v830
        %v1113 = vpop.f32.mrf.mxu0
        %v1114 = vadd.f32 %v1001, %v1113
        %1115 = vmatmul.f32.gmra.mxu0 %v832
        %v1116 = vpop.f32.mrf.mxu0
        %v1117 = vadd.f32 %v1004, %v1116
        %1118 = vmatmul.f32.gmra.mxu0 %v834
        %v1119 = vpop.f32.mrf.mxu0
        %v1120 = vadd.f32 %v1007, %v1119
        %1121 = vmatmul.f32.gmra.mxu0 %v836
        %v1122 = vpop.f32.mrf.mxu0
        %v1123 = vadd.f32 %v1010, %v1122
        %1124 = vmatmul.f32.gmra.mxu0 %v838
        %v1125 = vpop.f32.mrf.mxu0
        %v1126 = vadd.f32 %v1013, %v1125
        %1127 = vmatmul.f32.gmra.mxu0 %v840
        %v1128 = vpop.f32.mrf.mxu0
        %v1129 = vadd.f32 %v1016, %v1128
        %1130 = vmatmul.f32.gmra.mxu0 %v842
        %v1131 = vpop.f32.mrf.mxu0
        %v1132 = vadd.f32 %v1019, %v1131
        %1133 = vmatmul.f32.gmra.mxu0 %v844
        %v1134 = vpop.f32.mrf.mxu0
        %v1135 = vadd.f32 %v1022, %v1134
        %1136 = vmatmul.f32.gmra.mxu0 %v846
        %v1137 = vpop.f32.mrf.mxu0
        %v1138 = vadd.f32 %v1025, %v1137
        %1139 = vmatmul.f32.gmra.mxu0 %v848
        %v1140 = vpop.f32.mrf.mxu0
        %v1141 = vadd.f32 %v1028, %v1140
        %1142 = vmatmul.f32.gmra.mxu0 %v850
        %v1143 = vpop.f32.mrf.mxu0
        %v1144 = vadd.f32 %v1031, %v1143
        %1145 = vmatmul.f32.gmra.mxu0 %v852
        %v1146 = vpop.f32.mrf.mxu0
        %v1147 = vadd.f32 %v1034, %v1146
        %1148 = vdwg.mxu0
        %1149 = vmatpush.msra.mxu0 %v884
        %1150 = vmatpush.msra.mxu0 %v882
        %1151 = vmatpush.msra.mxu0 %v880
        %1152 = vmatpush.msra.mxu0 %v878
        %1153 = vmatpush.msra.mxu0 %v876
        %1154 = vmatpush.msra.mxu0 %v874
        %1155 = vmatpush.msra.mxu0 %v872
        %1156 = vmatpush.msra.mxu0 %v870
        %1157 = vmatpush.msra.mxu0 %v868
        %1158 = vmatpush.msra.mxu0 %v866
        %1159 = vmatpush.msra.mxu0 %v864
        %1160 = vmatpush.msra.mxu0 %v862
        %1161 = vmatpush.msra.mxu0 %v860
        %1162 = vmatpush.msra.mxu0 %v858
        %1163 = vmatpush.msra.mxu0 %v856
        %1164 = vmatpush.msra.mxu0 %v854
        %1165 = vmatmul.f32.gmra.mxu0 %v789
        %v1166 = vpop.f32.mrf.mxu0
        %v1167 = vadd.f32 %v920, %v1166
        %1168 = vmatmul.f32.gmra.mxu0 %v791
        %v1169 = vpop.f32.mrf.mxu0
        %v1170 = vadd.f32 %v920, %v1169
        %1171 = vmatmul.f32.gmra.mxu0 %v793
        %v1172 = vpop.f32.mrf.mxu0
        %v1173 = vadd.f32 %v920, %v1172
        %1174 = vmatmul.f32.gmra.mxu0 %v795
        %v1175 = vpop.f32.mrf.mxu0
        %v1176 = vadd.f32 %v920, %v1175
        %1177 = vmatmul.f32.gmra.mxu0 %v797
        %v1178 = vpop.f32.mrf.mxu0
        %v1179 = vadd.f32 %v920, %v1178
        %1180 = vmatmul.f32.gmra.mxu0 %v799
        %v1181 = vpop.f32.mrf.mxu0
        %v1182 = vadd.f32 %v920, %v1181
        %1183 = vmatmul.f32.gmra.mxu0 %v801
        %v1184 = vpop.f32.mrf.mxu0
        %v1185 = vadd.f32 %v920, %v1184
        %1186 = vmatmul.f32.gmra.mxu0 %v803
        %v1187 = vpop.f32.mrf.mxu0
        %v1188 = vadd.f32 %v920, %v1187
        %1189 = vmatmul.f32.gmra.mxu0 %v805
        %v1190 = vpop.f32.mrf.mxu0
        %v1191 = vadd.f32 %v920, %v1190
        %1192 = vmatmul.f32.gmra.mxu0 %v807
        %v1193 = vpop.f32.mrf.mxu0
        %v1194 = vadd.f32 %v920, %v1193
        %1195 = vmatmul.f32.gmra.mxu0 %v809
        %v1196 = vpop.f32.mrf.mxu0
        %v1197 = vadd.f32 %v920, %v1196
        %1198 = vmatmul.f32.gmra.mxu0 %v811
        %v1199 = vpop.f32.mrf.mxu0
        %v1200 = vadd.f32 %v920, %v1199
        %1201 = vmatmul.f32.gmra.mxu0 %v813
        %v1202 = vpop.f32.mrf.mxu0
        %v1203 = vadd.f32 %v920, %v1202
        %1204 = vmatmul.f32.gmra.mxu0 %v815
        %v1205 = vpop.f32.mrf.mxu0
        %v1206 = vadd.f32 %v920, %v1205
        %1207 = vmatmul.f32.gmra.mxu0 %v817
        %v1208 = vpop.f32.mrf.mxu0
        %v1209 = vadd.f32 %v920, %v1208
        %1210 = vmatmul.f32.gmra.mxu0 %v819
        %v1211 = vpop.f32.mrf.mxu0
        %v1212 = vadd.f32 %v920, %v1211
        %1213 = vmatmul.f32.gmra.mxu0 %v821
        %v1214 = vpop.f32.mrf.mxu0
        %v1215 = vadd.f32 %v920, %v1214
        %1216 = vmatmul.f32.gmra.mxu0 %v823
        %v1217 = vpop.f32.mrf.mxu0
        %v1218 = vadd.f32 %v920, %v1217
        %1219 = vmatmul.f32.gmra.mxu0 %v825
        %v1220 = vpop.f32.mrf.mxu0
        %v1221 = vadd.f32 %v920, %v1220
        %1222 = vmatmul.f32.gmra.mxu0 %v827
        %v1223 = vpop.f32.mrf.mxu0
        %v1224 = vadd.f32 %v920, %v1223
        %1225 = vmatmul.f32.gmra.mxu0 %v829
        %v1226 = vpop.f32.mrf.mxu0
        %v1227 = vadd.f32 %v920, %v1226
        %1228 = vmatmul.f32.gmra.mxu0 %v831
        %v1229 = vpop.f32.mrf.mxu0
        %v1230 = vadd.f32 %v920, %v1229
        %1231 = vmatmul.f32.gmra.mxu0 %v833
        %v1232 = vpop.f32.mrf.mxu0
        %v1233 = vadd.f32 %v920, %v1232
        %1234 = vmatmul.f32.gmra.mxu0 %v835
        %v1235 = vpop.f32.mrf.mxu0
        %v1236 = vadd.f32 %v920, %v1235
        %1237 = vmatmul.f32.gmra.mxu0 %v837
        %v1238 = vpop.f32.mrf.mxu0
        %v1239 = vadd.f32 %v920, %v1238
        %1240 = vmatmul.f32.gmra.mxu0 %v839
        %v1241 = vpop.f32.mrf.mxu0
        %v1242 = vadd.f32 %v920, %v1241
        %1243 = vmatmul.f32.gmra.mxu0 %v841
        %v1244 = vpop.f32.mrf.mxu0
        %v1245 = vadd.f32 %v920, %v1244
        %1246 = vmatmul.f32.gmra.mxu0 %v843
        %v1247 = vpop.f32.mrf.mxu0
        %v1248 = vadd.f32 %v920, %v1247
        %1249 = vmatmul.f32.gmra.mxu0 %v845
        %v1250 = vpop.f32.mrf.mxu0
        %v1251 = vadd.f32 %v920, %v1250
        %1252 = vmatmul.f32.gmra.mxu0 %v847
        %v1253 = vpop.f32.mrf.mxu0
        %v1254 = vadd.f32 %v920, %v1253
        %1255 = vmatmul.f32.gmra.mxu0 %v849
        %v1256 = vpop.f32.mrf.mxu0
        %v1257 = vadd.f32 %v920, %v1256
        %1258 = vmatmul.f32.gmra.mxu0 %v851
        %v1259 = vpop.f32.mrf.mxu0
        %v1260 = vadd.f32 %v920, %v1259
        %1261 = vdwg.mxu0
        %1262 = vmatpush.msra.mxu0 %v916
        %1263 = vmatpush.msra.mxu0 %v914
        %1264 = vmatpush.msra.mxu0 %v912
        %1265 = vmatpush.msra.mxu0 %v910
        %1266 = vmatpush.msra.mxu0 %v908
        %1267 = vmatpush.msra.mxu0 %v906
        %1268 = vmatpush.msra.mxu0 %v904
        %1269 = vmatpush.msra.mxu0 %v902
        %1270 = vmatpush.msra.mxu0 %v900
        %1271 = vmatpush.msra.mxu0 %v898
        %1272 = vmatpush.msra.mxu0 %v896
        %1273 = vmatpush.msra.mxu0 %v894
        %1274 = vmatpush.msra.mxu0 %v892
        %1275 = vmatpush.msra.mxu0 %v890
        %1276 = vmatpush.msra.mxu0 %v888
        %1277 = vmatpush.msra.mxu0 %v886
        %1278 = vmatmul.f32.gmra.mxu0 %v790
        %v1279 = vpop.f32.mrf.mxu0
        %v1280 = vadd.f32 %v1167, %v1279
        %1281 = vmatmul.f32.gmra.mxu0 %v792
        %v1282 = vpop.f32.mrf.mxu0
        %v1283 = vadd.f32 %v1170, %v1282
        %1284 = vmatmul.f32.gmra.mxu0 %v794
        %v1285 = vpop.f32.mrf.mxu0
        %v1286 = vadd.f32 %v1173, %v1285
        %1287 = vmatmul.f32.gmra.mxu0 %v796
        %v1288 = vpop.f32.mrf.mxu0
        %v1289 = vadd.f32 %v1176, %v1288
        %1290 = vmatmul.f32.gmra.mxu0 %v798
        %v1291 = vpop.f32.mrf.mxu0
        %v1292 = vadd.f32 %v1179, %v1291
        %1293 = vmatmul.f32.gmra.mxu0 %v800
        %v1294 = vpop.f32.mrf.mxu0
        %v1295 = vadd.f32 %v1182, %v1294
        %1296 = vmatmul.f32.gmra.mxu0 %v802
        %v1297 = vpop.f32.mrf.mxu0
        %v1298 = vadd.f32 %v1185, %v1297
        %1299 = vmatmul.f32.gmra.mxu0 %v804
        %v1300 = vpop.f32.mrf.mxu0
        %v1301 = vadd.f32 %v1188, %v1300
        %1302 = vmatmul.f32.gmra.mxu0 %v806
        %v1303 = vpop.f32.mrf.mxu0
        %v1304 = vadd.f32 %v1191, %v1303
        %1305 = vmatmul.f32.gmra.mxu0 %v808
        %v1306 = vpop.f32.mrf.mxu0
        %v1307 = vadd.f32 %v1194, %v1306
        %1308 = vmatmul.f32.gmra.mxu0 %v810
        %v1309 = vpop.f32.mrf.mxu0
        %v1310 = vadd.f32 %v1197, %v1309
        %1311 = vmatmul.f32.gmra.mxu0 %v812
        %v1312 = vpop.f32.mrf.mxu0
        %v1313 = vadd.f32 %v1200, %v1312
        %1314 = vmatmul.f32.gmra.mxu0 %v814
        %v1315 = vpop.f32.mrf.mxu0
        %v1316 = vadd.f32 %v1203, %v1315
        %1317 = vmatmul.f32.gmra.mxu0 %v816
        %v1318 = vpop.f32.mrf.mxu0
        %v1319 = vadd.f32 %v1206, %v1318
        %1320 = vmatmul.f32.gmra.mxu0 %v818
        %v1321 = vpop.f32.mrf.mxu0
        %v1322 = vadd.f32 %v1209, %v1321
        %1323 = vmatmul.f32.gmra.mxu0 %v820
        %v1324 = vpop.f32.mrf.mxu0
        %v1325 = vadd.f32 %v1212, %v1324
        %1326 = vmatmul.f32.gmra.mxu0 %v822
        %v1327 = vpop.f32.mrf.mxu0
        %v1328 = vadd.f32 %v1215, %v1327
        %1329 = vmatmul.f32.gmra.mxu0 %v824
        %v1330 = vpop.f32.mrf.mxu0
        %v1331 = vadd.f32 %v1218, %v1330
        %1332 = vmatmul.f32.gmra.mxu0 %v826
        %v1333 = vpop.f32.mrf.mxu0
        %v1334 = vadd.f32 %v1221, %v1333
        %1335 = vmatmul.f32.gmra.mxu0 %v828
        %v1336 = vpop.f32.mrf.mxu0
        %v1337 = vadd.f32 %v1224, %v1336
        %1338 = vmatmul.f32.gmra.mxu0 %v830
        %v1339 = vpop.f32.mrf.mxu0
        %v1340 = vadd.f32 %v1227, %v1339
        %1341 = vmatmul.f32.gmra.mxu0 %v832
        %v1342 = vpop.f32.mrf.mxu0
        %v1343 = vadd.f32 %v1230, %v1342
        %1344 = vmatmul.f32.gmra.mxu0 %v834
        %v1345 = vpop.f32.mrf.mxu0
        %v1346 = vadd.f32 %v1233, %v1345
        %1347 = vmatmul.f32.gmra.mxu0 %v836
        %v1348 = vpop.f32.mrf.mxu0
        %v1349 = vadd.f32 %v1236, %v1348
        %1350 = vmatmul.f32.gmra.mxu0 %v838
        %v1351 = vpop.f32.mrf.mxu0
        %v1352 = vadd.f32 %v1239, %v1351
        %1353 = vmatmul.f32.gmra.mxu0 %v840
        %v1354 = vpop.f32.mrf.mxu0
        %v1355 = vadd.f32 %v1242, %v1354
        %1356 = vmatmul.f32.gmra.mxu0 %v842
        %v1357 = vpop.f32.mrf.mxu0
        %v1358 = vadd.f32 %v1245, %v1357
        %1359 = vmatmul.f32.gmra.mxu0 %v844
        %v1360 = vpop.f32.mrf.mxu0
        %v1361 = vadd.f32 %v1248, %v1360
        %1362 = vmatmul.f32.gmra.mxu0 %v846
        %v1363 = vpop.f32.mrf.mxu0
        %v1364 = vadd.f32 %v1251, %v1363
        %1365 = vmatmul.f32.gmra.mxu0 %v848
        %v1366 = vpop.f32.mrf.mxu0
        %v1367 = vadd.f32 %v1254, %v1366
        %1368 = vmatmul.f32.gmra.mxu0 %v850
        %v1369 = vpop.f32.mrf.mxu0
        %v1370 = vadd.f32 %v1257, %v1369
        %1371 = vmatmul.f32.gmra.mxu0 %v852
        %v1372 = vpop.f32.mrf.mxu0
        %v1373 = vadd.f32 %v1260, %v1372
        %1374 = vdwg.mxu0
        %vm1375 = vcmp.ge.f32.partialorder %v1054, 0.0
        %vm1376 = vcmp.ge.f32.partialorder %v1280, 0.0
        %vm1377 = vcmp.ge.f32.partialorder %v1057, 0.0
        %vm1378 = vcmp.ge.f32.partialorder %v1283, 0.0
        %vm1379 = vcmp.ge.f32.partialorder %v1060, 0.0
        %vm1380 = vcmp.ge.f32.partialorder %v1286, 0.0
        %vm1381 = vcmp.ge.f32.partialorder %v1063, 0.0
        %vm1382 = vcmp.ge.f32.partialorder %v1289, 0.0
        %vm1383 = vcmp.ge.f32.partialorder %v1066, 0.0
        %vm1384 = vcmp.ge.f32.partialorder %v1292, 0.0
        %vm1385 = vcmp.ge.f32.partialorder %v1069, 0.0
        %vm1386 = vcmp.ge.f32.partialorder %v1295, 0.0
        %vm1387 = vcmp.ge.f32.partialorder %v1072, 0.0
        %vm1388 = vcmp.ge.f32.partialorder %v1298, 0.0
        %vm1389 = vcmp.ge.f32.partialorder %v1075, 0.0
        %vm1390 = vcmp.ge.f32.partialorder %v1301, 0.0
        %vm1391 = vcmp.ge.f32.partialorder %v1078, 0.0
        %vm1392 = vcmp.ge.f32.partialorder %v1304, 0.0
        %vm1393 = vcmp.ge.f32.partialorder %v1081, 0.0
        %vm1394 = vcmp.ge.f32.partialorder %v1307, 0.0
        %vm1395 = vcmp.ge.f32.partialorder %v1084, 0.0
        %vm1396 = vcmp.ge.f32.partialorder %v1310, 0.0
        %vm1397 = vcmp.ge.f32.partialorder %v1087, 0.0
        %vm1398 = vcmp.ge.f32.partialorder %v1313, 0.0
        %vm1399 = vcmp.ge.f32.partialorder %v1090, 0.0
        %vm1400 = vcmp.ge.f32.partialorder %v1316, 0.0
        %vm1401 = vcmp.ge.f32.partialorder %v1093, 0.0
        %vm1402 = vcmp.ge.f32.partialorder %v1319, 0.0
        %vm1403 = vcmp.ge.f32.partialorder %v1096, 0.0
        %vm1404 = vcmp.ge.f32.partialorder %v1322, 0.0
        %vm1405 = vcmp.ge.f32.partialorder %v1099, 0.0
        %vm1406 = vcmp.ge.f32.partialorder %v1325, 0.0
        %vm1407 = vcmp.ge.f32.partialorder %v1102, 0.0
        %vm1408 = vcmp.ge.f32.partialorder %v1328, 0.0
        %vm1409 = vcmp.ge.f32.partialorder %v1105, 0.0
        %vm1410 = vcmp.ge.f32.partialorder %v1331, 0.0
        %vm1411 = vcmp.ge.f32.partialorder %v1108, 0.0
        %vm1412 = vcmp.ge.f32.partialorder %v1334, 0.0
        %vm1413 = vcmp.ge.f32.partialorder %v1111, 0.0
        %vm1414 = vcmp.ge.f32.partialorder %v1337, 0.0
        %vm1415 = vcmp.ge.f32.partialorder %v1114, 0.0
        %vm1416 = vcmp.ge.f32.partialorder %v1340, 0.0
        %vm1417 = vcmp.ge.f32.partialorder %v1117, 0.0
        %vm1418 = vcmp.ge.f32.partialorder %v1343, 0.0
        %vm1419 = vcmp.ge.f32.partialorder %v1120, 0.0
        %vm1420 = vcmp.ge.f32.partialorder %v1346, 0.0
        %vm1421 = vcmp.ge.f32.partialorder %v1123, 0.0
        %vm1422 = vcmp.ge.f32.partialorder %v1349, 0.0
        %vm1423 = vcmp.ge.f32.partialorder %v1126, 0.0
        %vm1424 = vcmp.ge.f32.partialorder %v1352, 0.0
        %vm1425 = vcmp.ge.f32.partialorder %v1129, 0.0
        %vm1426 = vcmp.ge.f32.partialorder %v1355, 0.0
        %vm1427 = vcmp.ge.f32.partialorder %v1132, 0.0
        %vm1428 = vcmp.ge.f32.partialorder %v1358, 0.0
        %vm1429 = vcmp.ge.f32.partialorder %v1135, 0.0
        %vm1430 = vcmp.ge.f32.partialorder %v1361, 0.0
        %vm1431 = vcmp.ge.f32.partialorder %v1138, 0.0
        %vm1432 = vcmp.ge.f32.partialorder %v1364, 0.0
        %vm1433 = vcmp.ge.f32.partialorder %v1141, 0.0
        %vm1434 = vcmp.ge.f32.partialorder %v1367, 0.0
        %vm1435 = vcmp.ge.f32.partialorder %v1144, 0.0
        %vm1436 = vcmp.ge.f32.partialorder %v1370, 0.0
        %vm1437 = vcmp.ge.f32.partialorder %v1147, 0.0
        %vm1438 = vcmp.ge.f32.partialorder %v1373, 0.0
        %v1439 = vmul.f32 %v1054, 0.2
        %v1440 = vmul.f32 %v1280, 0.2
        %v1441 = vmul.f32 %v1057, 0.2
        %v1442 = vmul.f32 %v1283, 0.2
        %v1443 = vmul.f32 %v1060, 0.2
        %v1444 = vmul.f32 %v1286, 0.2
        %v1445 = vmul.f32 %v1063, 0.2
        %v1446 = vmul.f32 %v1289, 0.2
        %v1447 = vmul.f32 %v1066, 0.2
        %v1448 = vmul.f32 %v1292, 0.2
        %v1449 = vmul.f32 %v1069, 0.2
        %v1450 = vmul.f32 %v1295, 0.2
        %v1451 = vmul.f32 %v1072, 0.2
        %v1452 = vmul.f32 %v1298, 0.2
        %v1453 = vmul.f32 %v1075, 0.2
        %v1454 = vmul.f32 %v1301, 0.2
        %v1455 = vmul.f32 %v1078, 0.2
        %v1456 = vmul.f32 %v1304, 0.2
        %v1457 = vmul.f32 %v1081, 0.2
        %v1458 = vmul.f32 %v1307, 0.2
        %v1459 = vmul.f32 %v1084, 0.2
        %v1460 = vmul.f32 %v1310, 0.2
        %v1461 = vmul.f32 %v1087, 0.2
        %v1462 = vmul.f32 %v1313, 0.2
        %v1463 = vmul.f32 %v1090, 0.2
        %v1464 = vmul.f32 %v1316, 0.2
        %v1465 = vmul.f32 %v1093, 0.2
        %v1466 = vmul.f32 %v1319, 0.2
        %v1467 = vmul.f32 %v1096, 0.2
        %v1468 = vmul.f32 %v1322, 0.2
        %v1469 = vmul.f32 %v1099, 0.2
        %v1470 = vmul.f32 %v1325, 0.2
        %v1471 = vmul.f32 %v1102, 0.2
        %v1472 = vmul.f32 %v1328, 0.2
        %v1473 = vmul.f32 %v1105, 0.2
        %v1474 = vmul.f32 %v1331, 0.2
        %v1475 = vmul.f32 %v1108, 0.2
        %v1476 = vmul.f32 %v1334, 0.2
        %v1477 = vmul.f32 %v1111, 0.2
        %v1478 = vmul.f32 %v1337, 0.2
        %v1479 = vmul.f32 %v1114, 0.2
        %v1480 = vmul.f32 %v1340, 0.2
        %v1481 = vmul.f32 %v1117, 0.2
        %v1482 = vmul.f32 %v1343, 0.2
        %v1483 = vmul.f32 %v1120, 0.2
        %v1484 = vmul.f32 %v1346, 0.2
        %v1485 = vmul.f32 %v1123, 0.2
        %v1486 = vmul.f32 %v1349, 0.2
        %v1487 = vmul.f32 %v1126, 0.2
        %v1488 = vmul.f32 %v1352, 0.2
        %v1489 = vmul.f32 %v1129, 0.2
        %v1490 = vmul.f32 %v1355, 0.2
        %v1491 = vmul.f32 %v1132, 0.2
        %v1492 = vmul.f32 %v1358, 0.2
        %v1493 = vmul.f32 %v1135, 0.2
        %v1494 = vmul.f32 %v1361, 0.2
        %v1495 = vmul.f32 %v1138, 0.2
        %v1496 = vmul.f32 %v1364, 0.2
        %v1497 = vmul.f32 %v1141, 0.2
        %v1498 = vmul.f32 %v1367, 0.2
        %v1499 = vmul.f32 %v1144, 0.2
        %v1500 = vmul.f32 %v1370, 0.2
        %v1501 = vmul.f32 %v1147, 0.2
        %v1502 = vmul.f32 %v1373, 0.2
        %v1503 = vsel %vm1375, %v1054, %v1439
        %v1504 = vsel %vm1376, %v1280, %v1440
        %v1505 = vsel %vm1377, %v1057, %v1441
        %v1506 = vsel %vm1378, %v1283, %v1442
        %v1507 = vsel %vm1379, %v1060, %v1443
        %v1508 = vsel %vm1380, %v1286, %v1444
        %v1509 = vsel %vm1381, %v1063, %v1445
        %v1510 = vsel %vm1382, %v1289, %v1446
        %v1511 = vsel %vm1383, %v1066, %v1447
        %v1512 = vsel %vm1384, %v1292, %v1448
        %v1513 = vsel %vm1385, %v1069, %v1449
        %v1514 = vsel %vm1386, %v1295, %v1450
        %v1515 = vsel %vm1387, %v1072, %v1451
        %v1516 = vsel %vm1388, %v1298, %v1452
        %v1517 = vsel %vm1389, %v1075, %v1453
        %v1518 = vsel %vm1390, %v1301, %v1454
        %v1519 = vsel %vm1391, %v1078, %v1455
        %v1520 = vsel %vm1392, %v1304, %v1456
        %v1521 = vsel %vm1393, %v1081, %v1457
        %v1522 = vsel %vm1394, %v1307, %v1458
        %v1523 = vsel %vm1395, %v1084, %v1459
        %v1524 = vsel %vm1396, %v1310, %v1460
        %v1525 = vsel %vm1397, %v1087, %v1461
        %v1526 = vsel %vm1398, %v1313, %v1462
        %v1527 = vsel %vm1399, %v1090, %v1463
        %v1528 = vsel %vm1400, %v1316, %v1464
        %v1529 = vsel %vm1401, %v1093, %v1465
        %v1530 = vsel %vm1402, %v1319, %v1466
        %v1531 = vsel %vm1403, %v1096, %v1467
        %v1532 = vsel %vm1404, %v1322, %v1468
        %v1533 = vsel %vm1405, %v1099, %v1469
        %v1534 = vsel %vm1406, %v1325, %v1470
        %v1535 = vsel %vm1407, %v1102, %v1471
        %v1536 = vsel %vm1408, %v1328, %v1472
        %v1537 = vsel %vm1409, %v1105, %v1473
        %v1538 = vsel %vm1410, %v1331, %v1474
        %v1539 = vsel %vm1411, %v1108, %v1475
        %v1540 = vsel %vm1412, %v1334, %v1476
        %v1541 = vsel %vm1413, %v1111, %v1477
        %v1542 = vsel %vm1414, %v1337, %v1478
        %v1543 = vsel %vm1415, %v1114, %v1479
        %v1544 = vsel %vm1416, %v1340, %v1480
        %v1545 = vsel %vm1417, %v1117, %v1481
        %v1546 = vsel %vm1418, %v1343, %v1482
        %v1547 = vsel %vm1419, %v1120, %v1483
        %v1548 = vsel %vm1420, %v1346, %v1484
        %v1549 = vsel %vm1421, %v1123, %v1485
        %v1550 = vsel %vm1422, %v1349, %v1486
        %v1551 = vsel %vm1423, %v1126, %v1487
        %v1552 = vsel %vm1424, %v1352, %v1488
        %v1553 = vsel %vm1425, %v1129, %v1489
        %v1554 = vsel %vm1426, %v1355, %v1490
        %v1555 = vsel %vm1427, %v1132, %v1491
        %v1556 = vsel %vm1428, %v1358, %v1492
        %v1557 = vsel %vm1429, %v1135, %v1493
        %v1558 = vsel %vm1430, %v1361, %v1494
        %v1559 = vsel %vm1431, %v1138, %v1495
        %v1560 = vsel %vm1432, %v1364, %v1496
        %v1561 = vsel %vm1433, %v1141, %v1497
        %v1562 = vsel %vm1434, %v1367, %v1498
        %v1563 = vsel %vm1435, %v1144, %v1499
        %v1564 = vsel %vm1436, %v1370, %v1500
        %v1565 = vsel %vm1437, %v1147, %v1501
        %v1566 = vsel %vm1438, %v1373, %v1502
        %v1567 = vld [vmem:[#allocation10] sm:$0xff]
        %v1568 = vld [vmem:[#allocation10 + $0x8] sm:$0xff]
        %v1569 = vld [vmem:[#allocation10 + $0x10] sm:$0xff]
        %v1570 = vld [vmem:[#allocation10 + $0x18] sm:$0xff]
        %v1571 = vld [vmem:[#allocation10 + $0x20] sm:$0xff]
        %v1572 = vld [vmem:[#allocation10 + $0x28] sm:$0xff]
        %v1573 = vld [vmem:[#allocation10 + $0x30] sm:$0xff]
        %v1574 = vld [vmem:[#allocation10 + $0x38] sm:$0xff]
        %v1575 = vld [vmem:[#allocation10 + $0x40] sm:$0xff]
        %v1576 = vld [vmem:[#allocation10 + $0x48] sm:$0xff]
        %v1577 = vld [vmem:[#allocation10 + $0x50] sm:$0xff]
        %v1578 = vld [vmem:[#allocation10 + $0x58] sm:$0xff]
        %v1579 = vld [vmem:[#allocation10 + $0x60] sm:$0xff]
        %v1580 = vld [vmem:[#allocation10 + $0x68] sm:$0xff]
        %v1581 = vld [vmem:[#allocation10 + $0x70] sm:$0xff]
        %v1582 = vld [vmem:[#allocation10 + $0x78] sm:$0xff]
        %v1583 = vld [vmem:[#allocation10 + $0x80] sm:$0xff]
        %v1584 = vld [vmem:[#allocation10 + $0x88] sm:$0xff]
        %v1585 = vld [vmem:[#allocation10 + $0x90] sm:$0xff]
        %v1586 = vld [vmem:[#allocation10 + $0x98] sm:$0xff]
        %v1587 = vld [vmem:[#allocation10 + $0xa0] sm:$0xff]
        %v1588 = vld [vmem:[#allocation10 + $0xa8] sm:$0xff]
        %v1589 = vld [vmem:[#allocation10 + $0xb0] sm:$0xff]
        %v1590 = vld [vmem:[#allocation10 + $0xb8] sm:$0xff]
        %v1591 = vld [vmem:[#allocation10 + $0xc0] sm:$0xff]
        %v1592 = vld [vmem:[#allocation10 + $0xc8] sm:$0xff]
        %v1593 = vld [vmem:[#allocation10 + $0xd0] sm:$0xff]
        %v1594 = vld [vmem:[#allocation10 + $0xd8] sm:$0xff]
        %v1595 = vld [vmem:[#allocation10 + $0xe0] sm:$0xff]
        %v1596 = vld [vmem:[#allocation10 + $0xe8] sm:$0xff]
        %v1597 = vld [vmem:[#allocation10 + $0xf0] sm:$0xff]
        %v1598 = vld [vmem:[#allocation10 + $0xf8] sm:$0xff]
        %v1599 = vld [vmem:[%s6] sm:$0x1]
        %v1601 = vperm.slane %v1599, 0
        %1603 = vmatpush.msra.mxu0 %v1582
        %1604 = vmatpush.msra.mxu0 %v1581
        %1605 = vmatpush.msra.mxu0 %v1580
        %1606 = vmatpush.msra.mxu0 %v1579
        %1607 = vmatpush.msra.mxu0 %v1578
        %1608 = vmatpush.msra.mxu0 %v1577
        %1609 = vmatpush.msra.mxu0 %v1576
        %1610 = vmatpush.msra.mxu0 %v1575
        %1611 = vmatpush.msra.mxu0 %v1574
        %1612 = vmatpush.msra.mxu0 %v1573
        %1613 = vmatpush.msra.mxu0 %v1572
        %1614 = vmatpush.msra.mxu0 %v1571
        %1615 = vmatpush.msra.mxu0 %v1570
        %1616 = vmatpush.msra.mxu0 %v1569
        %1617 = vmatpush.msra.mxu0 %v1568
        %1618 = vmatpush.msra.mxu0 %v1567
        %1619 = vmatmul.f32.gmra.mxu0 %v1503
        %v1620 = vpop.f32.mrf.mxu0
        %v1621 = vadd.f32 %v1601, %v1620
        %1622 = vmatmul.f32.gmra.mxu0 %v1505
        %v1623 = vpop.f32.mrf.mxu0
        %v1624 = vadd.f32 %v1601, %v1623
        %1625 = vmatmul.f32.gmra.mxu0 %v1507
        %v1626 = vpop.f32.mrf.mxu0
        %v1627 = vadd.f32 %v1601, %v1626
        %1628 = vmatmul.f32.gmra.mxu0 %v1509
        %v1629 = vpop.f32.mrf.mxu0
        %v1630 = vadd.f32 %v1601, %v1629
        %1631 = vmatmul.f32.gmra.mxu0 %v1511
        %v1632 = vpop.f32.mrf.mxu0
        %v1633 = vadd.f32 %v1601, %v1632
        %1634 = vmatmul.f32.gmra.mxu0 %v1513
        %v1635 = vpop.f32.mrf.mxu0
        %v1636 = vadd.f32 %v1601, %v1635
        %1637 = vmatmul.f32.gmra.mxu0 %v1515
        %v1638 = vpop.f32.mrf.mxu0
        %v1639 = vadd.f32 %v1601, %v1638
        %1640 = vmatmul.f32.gmra.mxu0 %v1517
        %v1641 = vpop.f32.mrf.mxu0
        %v1642 = vadd.f32 %v1601, %v1641
        %1643 = vmatmul.f32.gmra.mxu0 %v1519
        %v1644 = vpop.f32.mrf.mxu0
        %v1645 = vadd.f32 %v1601, %v1644
        %1646 = vmatmul.f32.gmra.mxu0 %v1521
        %v1647 = vpop.f32.mrf.mxu0
        %v1648 = vadd.f32 %v1601, %v1647
        %1649 = vmatmul.f32.gmra.mxu0 %v1523
        %v1650 = vpop.f32.mrf.mxu0
        %v1651 = vadd.f32 %v1601, %v1650
        %1652 = vmatmul.f32.gmra.mxu0 %v1525
        %v1653 = vpop.f32.mrf.mxu0
        %v1654 = vadd.f32 %v1601, %v1653
        %1655 = vmatmul.f32.gmra.mxu0 %v1527
        %v1656 = vpop.f32.mrf.mxu0
        %v1657 = vadd.f32 %v1601, %v1656
        %1658 = vmatmul.f32.gmra.mxu0 %v1529
        %v1659 = vpop.f32.mrf.mxu0
        %v1660 = vadd.f32 %v1601, %v1659
        %1661 = vmatmul.f32.gmra.mxu0 %v1531
        %v1662 = vpop.f32.mrf.mxu0
        %v1663 = vadd.f32 %v1601, %v1662
        %1664 = vmatmul.f32.gmra.mxu0 %v1533
        %v1665 = vpop.f32.mrf.mxu0
        %v1666 = vadd.f32 %v1601, %v1665
        %1667 = vmatmul.f32.gmra.mxu0 %v1535
        %v1668 = vpop.f32.mrf.mxu0
        %v1669 = vadd.f32 %v1601, %v1668
        %1670 = vmatmul.f32.gmra.mxu0 %v1537
        %v1671 = vpop.f32.mrf.mxu0
        %v1672 = vadd.f32 %v1601, %v1671
        %1673 = vmatmul.f32.gmra.mxu0 %v1539
        %v1674 = vpop.f32.mrf.mxu0
        %v1675 = vadd.f32 %v1601, %v1674
        %1676 = vmatmul.f32.gmra.mxu0 %v1541
        %v1677 = vpop.f32.mrf.mxu0
        %v1678 = vadd.f32 %v1601, %v1677
        %1679 = vmatmul.f32.gmra.mxu0 %v1543
        %v1680 = vpop.f32.mrf.mxu0
        %v1681 = vadd.f32 %v1601, %v1680
        %1682 = vmatmul.f32.gmra.mxu0 %v1545
        %v1683 = vpop.f32.mrf.mxu0
        %v1684 = vadd.f32 %v1601, %v1683
        %1685 = vmatmul.f32.gmra.mxu0 %v1547
        %v1686 = vpop.f32.mrf.mxu0
        %v1687 = vadd.f32 %v1601, %v1686
        %1688 = vmatmul.f32.gmra.mxu0 %v1549
        %v1689 = vpop.f32.mrf.mxu0
        %v1690 = vadd.f32 %v1601, %v1689
        %1691 = vmatmul.f32.gmra.mxu0 %v1551
        %v1692 = vpop.f32.mrf.mxu0
        %v1693 = vadd.f32 %v1601, %v1692
        %1694 = vmatmul.f32.gmra.mxu0 %v1553
        %v1695 = vpop.f32.mrf.mxu0
        %v1696 = vadd.f32 %v1601, %v1695
        %1697 = vmatmul.f32.gmra.mxu0 %v1555
        %v1698 = vpop.f32.mrf.mxu0
        %v1699 = vadd.f32 %v1601, %v1698
        %1700 = vmatmul.f32.gmra.mxu0 %v1557
        %v1701 = vpop.f32.mrf.mxu0
        %v1702 = vadd.f32 %v1601, %v1701
        %1703 = vmatmul.f32.gmra.mxu0 %v1559
        %v1704 = vpop.f32.mrf.mxu0
        %v1705 = vadd.f32 %v1601, %v1704
        %1706 = vmatmul.f32.gmra.mxu0 %v1561
        %v1707 = vpop.f32.mrf.mxu0
        %v1708 = vadd.f32 %v1601, %v1707
        %1709 = vmatmul.f32.gmra.mxu0 %v1563
        %v1710 = vpop.f32.mrf.mxu0
        %v1711 = vadd.f32 %v1601, %v1710
        %1712 = vmatmul.f32.gmra.mxu0 %v1565
        %v1713 = vpop.f32.mrf.mxu0
        %v1714 = vadd.f32 %v1601, %v1713
        %1715 = vdwg.mxu0
        %1716 = vmatpush.msra.mxu0 %v1598
        %1717 = vmatpush.msra.mxu0 %v1597
        %1718 = vmatpush.msra.mxu0 %v1596
        %1719 = vmatpush.msra.mxu0 %v1595
        %1720 = vmatpush.msra.mxu0 %v1594
        %1721 = vmatpush.msra.mxu0 %v1593
        %1722 = vmatpush.msra.mxu0 %v1592
        %1723 = vmatpush.msra.mxu0 %v1591
        %1724 = vmatpush.msra.mxu0 %v1590
        %1725 = vmatpush.msra.mxu0 %v1589
        %1726 = vmatpush.msra.mxu0 %v1588
        %1727 = vmatpush.msra.mxu0 %v1587
        %1728 = vmatpush.msra.mxu0 %v1586
        %1729 = vmatpush.msra.mxu0 %v1585
        %1730 = vmatpush.msra.mxu0 %v1584
        %1731 = vmatpush.msra.mxu0 %v1583
        %1732 = vmatmul.f32.gmra.mxu0 %v1504
        %v1733 = vpop.f32.mrf.mxu0
        %v1734 = vadd.f32 %v1621, %v1733
        %1735 = vmatmul.f32.gmra.mxu0 %v1506
        %v1736 = vpop.f32.mrf.mxu0
        %v1737 = vadd.f32 %v1624, %v1736
        %1738 = vmatmul.f32.gmra.mxu0 %v1508
        %v1739 = vpop.f32.mrf.mxu0
        %v1740 = vadd.f32 %v1627, %v1739
        %1741 = vmatmul.f32.gmra.mxu0 %v1510
        %v1742 = vpop.f32.mrf.mxu0
        %v1743 = vadd.f32 %v1630, %v1742
        %1744 = vmatmul.f32.gmra.mxu0 %v1512
        %v1745 = vpop.f32.mrf.mxu0
        %v1746 = vadd.f32 %v1633, %v1745
        %1747 = vmatmul.f32.gmra.mxu0 %v1514
        %v1748 = vpop.f32.mrf.mxu0
        %v1749 = vadd.f32 %v1636, %v1748
        %1750 = vmatmul.f32.gmra.mxu0 %v1516
        %v1751 = vpop.f32.mrf.mxu0
        %v1752 = vadd.f32 %v1639, %v1751
        %1753 = vmatmul.f32.gmra.mxu0 %v1518
        %v1754 = vpop.f32.mrf.mxu0
        %v1755 = vadd.f32 %v1642, %v1754
        %1756 = vmatmul.f32.gmra.mxu0 %v1520
        %v1757 = vpop.f32.mrf.mxu0
        %v1758 = vadd.f32 %v1645, %v1757
        %1759 = vmatmul.f32.gmra.mxu0 %v1522
        %v1760 = vpop.f32.mrf.mxu0
        %v1761 = vadd.f32 %v1648, %v1760
        %1762 = vmatmul.f32.gmra.mxu0 %v1524
        %v1763 = vpop.f32.mrf.mxu0
        %v1764 = vadd.f32 %v1651, %v1763
        %1765 = vmatmul.f32.gmra.mxu0 %v1526
        %v1766 = vpop.f32.mrf.mxu0
        %v1767 = vadd.f32 %v1654, %v1766
        %1768 = vmatmul.f32.gmra.mxu0 %v1528
        %v1769 = vpop.f32.mrf.mxu0
        %v1770 = vadd.f32 %v1657, %v1769
        %1771 = vmatmul.f32.gmra.mxu0 %v1530
        %v1772 = vpop.f32.mrf.mxu0
        %v1773 = vadd.f32 %v1660, %v1772
        %1774 = vmatmul.f32.gmra.mxu0 %v1532
        %v1775 = vpop.f32.mrf.mxu0
        %v1776 = vadd.f32 %v1663, %v1775
        %1777 = vmatmul.f32.gmra.mxu0 %v1534
        %v1778 = vpop.f32.mrf.mxu0
        %v1779 = vadd.f32 %v1666, %v1778
        %1780 = vmatmul.f32.gmra.mxu0 %v1536
        %v1781 = vpop.f32.mrf.mxu0
        %v1782 = vadd.f32 %v1669, %v1781
        %1783 = vmatmul.f32.gmra.mxu0 %v1538
        %v1784 = vpop.f32.mrf.mxu0
        %v1785 = vadd.f32 %v1672, %v1784
        %1786 = vmatmul.f32.gmra.mxu0 %v1540
        %v1787 = vpop.f32.mrf.mxu0
        %v1788 = vadd.f32 %v1675, %v1787
        %1789 = vmatmul.f32.gmra.mxu0 %v1542
        %v1790 = vpop.f32.mrf.mxu0
        %v1791 = vadd.f32 %v1678, %v1790
        %1792 = vmatmul.f32.gmra.mxu0 %v1544
        %v1793 = vpop.f32.mrf.mxu0
        %v1794 = vadd.f32 %v1681, %v1793
        %1795 = vmatmul.f32.gmra.mxu0 %v1546
        %v1796 = vpop.f32.mrf.mxu0
        %v1797 = vadd.f32 %v1684, %v1796
        %1798 = vmatmul.f32.gmra.mxu0 %v1548
        %v1799 = vpop.f32.mrf.mxu0
        %v1800 = vadd.f32 %v1687, %v1799
        %1801 = vmatmul.f32.gmra.mxu0 %v1550
        %v1802 = vpop.f32.mrf.mxu0
        %v1803 = vadd.f32 %v1690, %v1802
        %1804 = vmatmul.f32.gmra.mxu0 %v1552
        %v1805 = vpop.f32.mrf.mxu0
        %v1806 = vadd.f32 %v1693, %v1805
        %1807 = vmatmul.f32.gmra.mxu0 %v1554
        %v1808 = vpop.f32.mrf.mxu0
        %v1809 = vadd.f32 %v1696, %v1808
        %1810 = vmatmul.f32.gmra.mxu0 %v1556
        %v1811 = vpop.f32.mrf.mxu0
        %v1812 = vadd.f32 %v1699, %v1811
        %1813 = vmatmul.f32.gmra.mxu0 %v1558
        %v1814 = vpop.f32.mrf.mxu0
        %v1815 = vadd.f32 %v1702, %v1814
        %1816 = vmatmul.f32.gmra.mxu0 %v1560
        %v1817 = vpop.f32.mrf.mxu0
        %v1818 = vadd.f32 %v1705, %v1817
        %1819 = vmatmul.f32.gmra.mxu0 %v1562
        %v1820 = vpop.f32.mrf.mxu0
        %v1821 = vadd.f32 %v1708, %v1820
        %1822 = vmatmul.f32.gmra.mxu0 %v1564
        %v1823 = vpop.f32.mrf.mxu0
        %v1824 = vadd.f32 %v1711, %v1823
        %1825 = vmatmul.f32.gmra.mxu0 %v1566
        %v1826 = vpop.f32.mrf.mxu0
        %v1827 = vadd.f32 %v1714, %v1826
        %1828 = vdwg.mxu0
        %v1829 = vxor.u32 %v1734, 2147483648
        %v1830 = vxor.u32 %v1737, 2147483648
        %v1831 = vxor.u32 %v1740, 2147483648
        %v1832 = vxor.u32 %v1743, 2147483648
        %v1833 = vxor.u32 %v1746, 2147483648
        %v1834 = vxor.u32 %v1749, 2147483648
        %v1835 = vxor.u32 %v1752, 2147483648
        %v1836 = vxor.u32 %v1755, 2147483648
        %v1837 = vxor.u32 %v1758, 2147483648
        %v1838 = vxor.u32 %v1761, 2147483648
        %v1839 = vxor.u32 %v1764, 2147483648
        %v1840 = vxor.u32 %v1767, 2147483648
        %v1841 = vxor.u32 %v1770, 2147483648
        %v1842 = vxor.u32 %v1773, 2147483648
        %v1843 = vxor.u32 %v1776, 2147483648
        %v1844 = vxor.u32 %v1779, 2147483648
        %v1845 = vxor.u32 %v1782, 2147483648
        %v1846 = vxor.u32 %v1785, 2147483648
        %v1847 = vxor.u32 %v1788, 2147483648
        %v1848 = vxor.u32 %v1791, 2147483648
        %v1849 = vxor.u32 %v1794, 2147483648
        %v1850 = vxor.u32 %v1797, 2147483648
        %v1851 = vxor.u32 %v1800, 2147483648
        %v1852 = vxor.u32 %v1803, 2147483648
        %v1853 = vxor.u32 %v1806, 2147483648
        %v1854 = vxor.u32 %v1809, 2147483648
        %v1855 = vxor.u32 %v1812, 2147483648
        %v1856 = vxor.u32 %v1815, 2147483648
        %v1857 = vxor.u32 %v1818, 2147483648
        %v1858 = vxor.u32 %v1821, 2147483648
        %v1859 = vxor.u32 %v1824, 2147483648
        %v1860 = vxor.u32 %v1827, 2147483648
        %v1861 = vmul.f32 %v1829, 1.442695
        %v1862 = vpow.pop %v1861
        %v1863 = vmul.f32 %v1830, 1.442695
        %v1864 = vpow.pop %v1863
        %v1865 = vmul.f32 %v1831, 1.442695
        %v1866 = vpow.pop %v1865
        %v1867 = vmul.f32 %v1832, 1.442695
        %v1868 = vpow.pop %v1867
        %v1869 = vmul.f32 %v1833, 1.442695
        %v1870 = vpow.pop %v1869
        %v1871 = vmul.f32 %v1834, 1.442695
        %v1872 = vpow.pop %v1871
        %v1873 = vmul.f32 %v1835, 1.442695
        %v1874 = vpow.pop %v1873
        %v1875 = vmul.f32 %v1836, 1.442695
        %v1876 = vpow.pop %v1875
        %v1877 = vmul.f32 %v1837, 1.442695
        %v1878 = vpow.pop %v1877
        %v1879 = vmul.f32 %v1838, 1.442695
        %v1880 = vpow.pop %v1879
        %v1881 = vmul.f32 %v1839, 1.442695
        %v1882 = vpow.pop %v1881
        %v1883 = vmul.f32 %v1840, 1.442695
        %v1884 = vpow.pop %v1883
        %v1885 = vmul.f32 %v1841, 1.442695
        %v1886 = vpow.pop %v1885
        %v1887 = vmul.f32 %v1842, 1.442695
        %v1888 = vpow.pop %v1887
        %v1889 = vmul.f32 %v1843, 1.442695
        %v1890 = vpow.pop %v1889
        %v1891 = vmul.f32 %v1844, 1.442695
        %v1892 = vpow.pop %v1891
        %v1893 = vmul.f32 %v1845, 1.442695
        %v1894 = vpow.pop %v1893
        %v1895 = vmul.f32 %v1846, 1.442695
        %v1896 = vpow.pop %v1895
        %v1897 = vmul.f32 %v1847, 1.442695
        %v1898 = vpow.pop %v1897
        %v1899 = vmul.f32 %v1848, 1.442695
        %v1900 = vpow.pop %v1899
        %v1901 = vmul.f32 %v1849, 1.442695
        %v1902 = vpow.pop %v1901
        %v1903 = vmul.f32 %v1850, 1.442695
        %v1904 = vpow.pop %v1903
        %v1905 = vmul.f32 %v1851, 1.442695
        %v1906 = vpow.pop %v1905
        %v1907 = vmul.f32 %v1852, 1.442695
        %v1908 = vpow.pop %v1907
        %v1909 = vmul.f32 %v1853, 1.442695
        %v1910 = vpow.pop %v1909
        %v1911 = vmul.f32 %v1854, 1.442695
        %v1912 = vpow.pop %v1911
        %v1913 = vmul.f32 %v1855, 1.442695
        %v1914 = vpow.pop %v1913
        %v1915 = vmul.f32 %v1856, 1.442695
        %v1916 = vpow.pop %v1915
        %v1917 = vmul.f32 %v1857, 1.442695
        %v1918 = vpow.pop %v1917
        %v1919 = vmul.f32 %v1858, 1.442695
        %v1920 = vpow.pop %v1919
        %v1921 = vmul.f32 %v1859, 1.442695
        %v1922 = vpow.pop %v1921
        %v1923 = vmul.f32 %v1860, 1.442695
        %v1924 = vpow.pop %v1923
        %v1925 = vadd.f32 %v1862, 1.0
        %v1926 = vadd.f32 %v1864, 1.0
        %v1927 = vadd.f32 %v1866, 1.0
        %v1928 = vadd.f32 %v1868, 1.0
        %v1929 = vadd.f32 %v1870, 1.0
        %v1930 = vadd.f32 %v1872, 1.0
        %v1931 = vadd.f32 %v1874, 1.0
        %v1932 = vadd.f32 %v1876, 1.0
        %v1933 = vadd.f32 %v1878, 1.0
        %v1934 = vadd.f32 %v1880, 1.0
        %v1935 = vadd.f32 %v1882, 1.0
        %v1936 = vadd.f32 %v1884, 1.0
        %v1937 = vadd.f32 %v1886, 1.0
        %v1938 = vadd.f32 %v1888, 1.0
        %v1939 = vadd.f32 %v1890, 1.0
        %v1940 = vadd.f32 %v1892, 1.0
        %v1941 = vadd.f32 %v1894, 1.0
        %v1942 = vadd.f32 %v1896, 1.0
        %v1943 = vadd.f32 %v1898, 1.0
        %v1944 = vadd.f32 %v1900, 1.0
        %v1945 = vadd.f32 %v1902, 1.0
        %v1946 = vadd.f32 %v1904, 1.0
        %v1947 = vadd.f32 %v1906, 1.0
        %v1948 = vadd.f32 %v1908, 1.0
        %v1949 = vadd.f32 %v1910, 1.0
        %v1950 = vadd.f32 %v1912, 1.0
        %v1951 = vadd.f32 %v1914, 1.0
        %v1952 = vadd.f32 %v1916, 1.0
        %v1953 = vadd.f32 %v1918, 1.0
        %v1954 = vadd.f32 %v1920, 1.0
        %v1955 = vadd.f32 %v1922, 1.0
        %v1956 = vadd.f32 %v1924, 1.0
        %v1957 = vrcp.pop %v1925
        %v1958 = vmul.f32 %v1925, %v1957
        %v1959 = vsub.f32 1.0, %v1958
        %v1960 = vmul.f32 %v1957, %v1959
        %v1961 = vadd.f32 %v1957, %v1960
        %vm1962 = vweird.f32 %v1925
        %vm1963 = vweird.f32 %v1957
        %vm1964 = vmor %vm1962, %vm1963
        %v1965 = vsel %vm1964, %v1957, %v1961
        %v1966 = vand.u32 2147483647, %v1925
        %vm1967 = vcmp.eq.f32.partialorder %v1966, 8.507059e+37
        %v1968 = vand.u32 %v1925, 2147483648
        %v1969 = vor.u32 1.1754944e-38, %v1968
        %v1970 = vsel %vm1967, %v1969, %v1965
        %v1971 = vmul.f32 1.0, %v1970
        %v1972 = vrcp.pop %v1926
        %v1973 = vmul.f32 %v1926, %v1972
        %v1974 = vsub.f32 1.0, %v1973
        %v1975 = vmul.f32 %v1972, %v1974
        %v1976 = vadd.f32 %v1972, %v1975
        %vm1977 = vweird.f32 %v1926
        %vm1978 = vweird.f32 %v1972
        %vm1979 = vmor %vm1977, %vm1978
        %v1980 = vsel %vm1979, %v1972, %v1976
        %v1981 = vand.u32 2147483647, %v1926
        %vm1982 = vcmp.eq.f32.partialorder %v1981, 8.507059e+37
        %v1983 = vand.u32 %v1926, 2147483648
        %v1984 = vor.u32 1.1754944e-38, %v1983
        %v1985 = vsel %vm1982, %v1984, %v1980
        %v1986 = vmul.f32 1.0, %v1985
        %v1987 = vrcp.pop %v1927
        %v1988 = vmul.f32 %v1927, %v1987
        %v1989 = vsub.f32 1.0, %v1988
        %v1990 = vmul.f32 %v1987, %v1989
        %v1991 = vadd.f32 %v1987, %v1990
        %vm1992 = vweird.f32 %v1927
        %vm1993 = vweird.f32 %v1987
        %vm1994 = vmor %vm1992, %vm1993
        %v1995 = vsel %vm1994, %v1987, %v1991
        %v1996 = vand.u32 2147483647, %v1927
        %vm1997 = vcmp.eq.f32.partialorder %v1996, 8.507059e+37
        %v1998 = vand.u32 %v1927, 2147483648
        %v1999 = vor.u32 1.1754944e-38, %v1998
        %v2000 = vsel %vm1997, %v1999, %v1995
        %v2001 = vmul.f32 1.0, %v2000
        %v2002 = vrcp.pop %v1928
        %v2003 = vmul.f32 %v1928, %v2002
        %v2004 = vsub.f32 1.0, %v2003
        %v2005 = vmul.f32 %v2002, %v2004
        %v2006 = vadd.f32 %v2002, %v2005
        %vm2007 = vweird.f32 %v1928
        %vm2008 = vweird.f32 %v2002
        %vm2009 = vmor %vm2007, %vm2008
        %v2010 = vsel %vm2009, %v2002, %v2006
        %v2011 = vand.u32 2147483647, %v1928
        %vm2012 = vcmp.eq.f32.partialorder %v2011, 8.507059e+37
        %v2013 = vand.u32 %v1928, 2147483648
        %v2014 = vor.u32 1.1754944e-38, %v2013
        %v2015 = vsel %vm2012, %v2014, %v2010
        %v2016 = vmul.f32 1.0, %v2015
        %v2017 = vrcp.pop %v1929
        %v2018 = vmul.f32 %v1929, %v2017
        %v2019 = vsub.f32 1.0, %v2018
        %v2020 = vmul.f32 %v2017, %v2019
        %v2021 = vadd.f32 %v2017, %v2020
        %vm2022 = vweird.f32 %v1929
        %vm2023 = vweird.f32 %v2017
        %vm2024 = vmor %vm2022, %vm2023
        %v2025 = vsel %vm2024, %v2017, %v2021
        %v2026 = vand.u32 2147483647, %v1929
        %vm2027 = vcmp.eq.f32.partialorder %v2026, 8.507059e+37
        %v2028 = vand.u32 %v1929, 2147483648
        %v2029 = vor.u32 1.1754944e-38, %v2028
        %v2030 = vsel %vm2027, %v2029, %v2025
        %v2031 = vmul.f32 1.0, %v2030
        %v2032 = vrcp.pop %v1930
        %v2033 = vmul.f32 %v1930, %v2032
        %v2034 = vsub.f32 1.0, %v2033
        %v2035 = vmul.f32 %v2032, %v2034
        %v2036 = vadd.f32 %v2032, %v2035
        %vm2037 = vweird.f32 %v1930
        %vm2038 = vweird.f32 %v2032
        %vm2039 = vmor %vm2037, %vm2038
        %v2040 = vsel %vm2039, %v2032, %v2036
        %v2041 = vand.u32 2147483647, %v1930
        %vm2042 = vcmp.eq.f32.partialorder %v2041, 8.507059e+37
        %v2043 = vand.u32 %v1930, 2147483648
        %v2044 = vor.u32 1.1754944e-38, %v2043
        %v2045 = vsel %vm2042, %v2044, %v2040
        %v2046 = vmul.f32 1.0, %v2045
        %v2047 = vrcp.pop %v1931
        %v2048 = vmul.f32 %v1931, %v2047
        %v2049 = vsub.f32 1.0, %v2048
        %v2050 = vmul.f32 %v2047, %v2049
        %v2051 = vadd.f32 %v2047, %v2050
        %vm2052 = vweird.f32 %v1931
        %vm2053 = vweird.f32 %v2047
        %vm2054 = vmor %vm2052, %vm2053
        %v2055 = vsel %vm2054, %v2047, %v2051
        %v2056 = vand.u32 2147483647, %v1931
        %vm2057 = vcmp.eq.f32.partialorder %v2056, 8.507059e+37
        %v2058 = vand.u32 %v1931, 2147483648
        %v2059 = vor.u32 1.1754944e-38, %v2058
        %v2060 = vsel %vm2057, %v2059, %v2055
        %v2061 = vmul.f32 1.0, %v2060
        %v2062 = vrcp.pop %v1932
        %v2063 = vmul.f32 %v1932, %v2062
        %v2064 = vsub.f32 1.0, %v2063
        %v2065 = vmul.f32 %v2062, %v2064
        %v2066 = vadd.f32 %v2062, %v2065
        %vm2067 = vweird.f32 %v1932
        %vm2068 = vweird.f32 %v2062
        %vm2069 = vmor %vm2067, %vm2068
        %v2070 = vsel %vm2069, %v2062, %v2066
        %v2071 = vand.u32 2147483647, %v1932
        %vm2072 = vcmp.eq.f32.partialorder %v2071, 8.507059e+37
        %v2073 = vand.u32 %v1932, 2147483648
        %v2074 = vor.u32 1.1754944e-38, %v2073
        %v2075 = vsel %vm2072, %v2074, %v2070
        %v2076 = vmul.f32 1.0, %v2075
        %v2077 = vrcp.pop %v1933
        %v2078 = vmul.f32 %v1933, %v2077
        %v2079 = vsub.f32 1.0, %v2078
        %v2080 = vmul.f32 %v2077, %v2079
        %v2081 = vadd.f32 %v2077, %v2080
        %vm2082 = vweird.f32 %v1933
        %vm2083 = vweird.f32 %v2077
        %vm2084 = vmor %vm2082, %vm2083
        %v2085 = vsel %vm2084, %v2077, %v2081
        %v2086 = vand.u32 2147483647, %v1933
        %vm2087 = vcmp.eq.f32.partialorder %v2086, 8.507059e+37
        %v2088 = vand.u32 %v1933, 2147483648
        %v2089 = vor.u32 1.1754944e-38, %v2088
        %v2090 = vsel %vm2087, %v2089, %v2085
        %v2091 = vmul.f32 1.0, %v2090
        %v2092 = vrcp.pop %v1934
        %v2093 = vmul.f32 %v1934, %v2092
        %v2094 = vsub.f32 1.0, %v2093
        %v2095 = vmul.f32 %v2092, %v2094
        %v2096 = vadd.f32 %v2092, %v2095
        %vm2097 = vweird.f32 %v1934
        %vm2098 = vweird.f32 %v2092
        %vm2099 = vmor %vm2097, %vm2098
        %v2100 = vsel %vm2099, %v2092, %v2096
        %v2101 = vand.u32 2147483647, %v1934
        %vm2102 = vcmp.eq.f32.partialorder %v2101, 8.507059e+37
        %v2103 = vand.u32 %v1934, 2147483648
        %v2104 = vor.u32 1.1754944e-38, %v2103
        %v2105 = vsel %vm2102, %v2104, %v2100
        %v2106 = vmul.f32 1.0, %v2105
        %v2107 = vrcp.pop %v1935
        %v2108 = vmul.f32 %v1935, %v2107
        %v2109 = vsub.f32 1.0, %v2108
        %v2110 = vmul.f32 %v2107, %v2109
        %v2111 = vadd.f32 %v2107, %v2110
        %vm2112 = vweird.f32 %v1935
        %vm2113 = vweird.f32 %v2107
        %vm2114 = vmor %vm2112, %vm2113
        %v2115 = vsel %vm2114, %v2107, %v2111
        %v2116 = vand.u32 2147483647, %v1935
        %vm2117 = vcmp.eq.f32.partialorder %v2116, 8.507059e+37
        %v2118 = vand.u32 %v1935, 2147483648
        %v2119 = vor.u32 1.1754944e-38, %v2118
        %v2120 = vsel %vm2117, %v2119, %v2115
        %v2121 = vmul.f32 1.0, %v2120
        %v2122 = vrcp.pop %v1936
        %v2123 = vmul.f32 %v1936, %v2122
        %v2124 = vsub.f32 1.0, %v2123
        %v2125 = vmul.f32 %v2122, %v2124
        %v2126 = vadd.f32 %v2122, %v2125
        %vm2127 = vweird.f32 %v1936
        %vm2128 = vweird.f32 %v2122
        %vm2129 = vmor %vm2127, %vm2128
        %v2130 = vsel %vm2129, %v2122, %v2126
        %v2131 = vand.u32 2147483647, %v1936
        %vm2132 = vcmp.eq.f32.partialorder %v2131, 8.507059e+37
        %v2133 = vand.u32 %v1936, 2147483648
        %v2134 = vor.u32 1.1754944e-38, %v2133
        %v2135 = vsel %vm2132, %v2134, %v2130
        %v2136 = vmul.f32 1.0, %v2135
        %v2137 = vrcp.pop %v1937
        %v2138 = vmul.f32 %v1937, %v2137
        %v2139 = vsub.f32 1.0, %v2138
        %v2140 = vmul.f32 %v2137, %v2139
        %v2141 = vadd.f32 %v2137, %v2140
        %vm2142 = vweird.f32 %v1937
        %vm2143 = vweird.f32 %v2137
        %vm2144 = vmor %vm2142, %vm2143
        %v2145 = vsel %vm2144, %v2137, %v2141
        %v2146 = vand.u32 2147483647, %v1937
        %vm2147 = vcmp.eq.f32.partialorder %v2146, 8.507059e+37
        %v2148 = vand.u32 %v1937, 2147483648
        %v2149 = vor.u32 1.1754944e-38, %v2148
        %v2150 = vsel %vm2147, %v2149, %v2145
        %v2151 = vmul.f32 1.0, %v2150
        %v2152 = vrcp.pop %v1938
        %v2153 = vmul.f32 %v1938, %v2152
        %v2154 = vsub.f32 1.0, %v2153
        %v2155 = vmul.f32 %v2152, %v2154
        %v2156 = vadd.f32 %v2152, %v2155
        %vm2157 = vweird.f32 %v1938
        %vm2158 = vweird.f32 %v2152
        %vm2159 = vmor %vm2157, %vm2158
        %v2160 = vsel %vm2159, %v2152, %v2156
        %v2161 = vand.u32 2147483647, %v1938
        %vm2162 = vcmp.eq.f32.partialorder %v2161, 8.507059e+37
        %v2163 = vand.u32 %v1938, 2147483648
        %v2164 = vor.u32 1.1754944e-38, %v2163
        %v2165 = vsel %vm2162, %v2164, %v2160
        %v2166 = vmul.f32 1.0, %v2165
        %v2167 = vrcp.pop %v1939
        %v2168 = vmul.f32 %v1939, %v2167
        %v2169 = vsub.f32 1.0, %v2168
        %v2170 = vmul.f32 %v2167, %v2169
        %v2171 = vadd.f32 %v2167, %v2170
        %vm2172 = vweird.f32 %v1939
        %vm2173 = vweird.f32 %v2167
        %vm2174 = vmor %vm2172, %vm2173
        %v2175 = vsel %vm2174, %v2167, %v2171
        %v2176 = vand.u32 2147483647, %v1939
        %vm2177 = vcmp.eq.f32.partialorder %v2176, 8.507059e+37
        %v2178 = vand.u32 %v1939, 2147483648
        %v2179 = vor.u32 1.1754944e-38, %v2178
        %v2180 = vsel %vm2177, %v2179, %v2175
        %v2181 = vmul.f32 1.0, %v2180
        %v2182 = vrcp.pop %v1940
        %v2183 = vmul.f32 %v1940, %v2182
        %v2184 = vsub.f32 1.0, %v2183
        %v2185 = vmul.f32 %v2182, %v2184
        %v2186 = vadd.f32 %v2182, %v2185
        %vm2187 = vweird.f32 %v1940
        %vm2188 = vweird.f32 %v2182
        %vm2189 = vmor %vm2187, %vm2188
        %v2190 = vsel %vm2189, %v2182, %v2186
        %v2191 = vand.u32 2147483647, %v1940
        %vm2192 = vcmp.eq.f32.partialorder %v2191, 8.507059e+37
        %v2193 = vand.u32 %v1940, 2147483648
        %v2194 = vor.u32 1.1754944e-38, %v2193
        %v2195 = vsel %vm2192, %v2194, %v2190
        %v2196 = vmul.f32 1.0, %v2195
        %v2197 = vrcp.pop %v1941
        %v2198 = vmul.f32 %v1941, %v2197
        %v2199 = vsub.f32 1.0, %v2198
        %v2200 = vmul.f32 %v2197, %v2199
        %v2201 = vadd.f32 %v2197, %v2200
        %vm2202 = vweird.f32 %v1941
        %vm2203 = vweird.f32 %v2197
        %vm2204 = vmor %vm2202, %vm2203
        %v2205 = vsel %vm2204, %v2197, %v2201
        %v2206 = vand.u32 2147483647, %v1941
        %vm2207 = vcmp.eq.f32.partialorder %v2206, 8.507059e+37
        %v2208 = vand.u32 %v1941, 2147483648
        %v2209 = vor.u32 1.1754944e-38, %v2208
        %v2210 = vsel %vm2207, %v2209, %v2205
        %v2211 = vmul.f32 1.0, %v2210
        %v2212 = vrcp.pop %v1942
        %v2213 = vmul.f32 %v1942, %v2212
        %v2214 = vsub.f32 1.0, %v2213
        %v2215 = vmul.f32 %v2212, %v2214
        %v2216 = vadd.f32 %v2212, %v2215
        %vm2217 = vweird.f32 %v1942
        %vm2218 = vweird.f32 %v2212
        %vm2219 = vmor %vm2217, %vm2218
        %v2220 = vsel %vm2219, %v2212, %v2216
        %v2221 = vand.u32 2147483647, %v1942
        %vm2222 = vcmp.eq.f32.partialorder %v2221, 8.507059e+37
        %v2223 = vand.u32 %v1942, 2147483648
        %v2224 = vor.u32 1.1754944e-38, %v2223
        %v2225 = vsel %vm2222, %v2224, %v2220
        %v2226 = vmul.f32 1.0, %v2225
        %v2227 = vrcp.pop %v1943
        %v2228 = vmul.f32 %v1943, %v2227
        %v2229 = vsub.f32 1.0, %v2228
        %v2230 = vmul.f32 %v2227, %v2229
        %v2231 = vadd.f32 %v2227, %v2230
        %vm2232 = vweird.f32 %v1943
        %vm2233 = vweird.f32 %v2227
        %vm2234 = vmor %vm2232, %vm2233
        %v2235 = vsel %vm2234, %v2227, %v2231
        %v2236 = vand.u32 2147483647, %v1943
        %vm2237 = vcmp.eq.f32.partialorder %v2236, 8.507059e+37
        %v2238 = vand.u32 %v1943, 2147483648
        %v2239 = vor.u32 1.1754944e-38, %v2238
        %v2240 = vsel %vm2237, %v2239, %v2235
        %v2241 = vmul.f32 1.0, %v2240
        %v2242 = vrcp.pop %v1944
        %v2243 = vmul.f32 %v1944, %v2242
        %v2244 = vsub.f32 1.0, %v2243
        %v2245 = vmul.f32 %v2242, %v2244
        %v2246 = vadd.f32 %v2242, %v2245
        %vm2247 = vweird.f32 %v1944
        %vm2248 = vweird.f32 %v2242
        %vm2249 = vmor %vm2247, %vm2248
        %v2250 = vsel %vm2249, %v2242, %v2246
        %v2251 = vand.u32 2147483647, %v1944
        %vm2252 = vcmp.eq.f32.partialorder %v2251, 8.507059e+37
        %v2253 = vand.u32 %v1944, 2147483648
        %v2254 = vor.u32 1.1754944e-38, %v2253
        %v2255 = vsel %vm2252, %v2254, %v2250
        %v2256 = vmul.f32 1.0, %v2255
        %v2257 = vrcp.pop %v1945
        %v2258 = vmul.f32 %v1945, %v2257
        %v2259 = vsub.f32 1.0, %v2258
        %v2260 = vmul.f32 %v2257, %v2259
        %v2261 = vadd.f32 %v2257, %v2260
        %vm2262 = vweird.f32 %v1945
        %vm2263 = vweird.f32 %v2257
        %vm2264 = vmor %vm2262, %vm2263
        %v2265 = vsel %vm2264, %v2257, %v2261
        %v2266 = vand.u32 2147483647, %v1945
        %vm2267 = vcmp.eq.f32.partialorder %v2266, 8.507059e+37
        %v2268 = vand.u32 %v1945, 2147483648
        %v2269 = vor.u32 1.1754944e-38, %v2268
        %v2270 = vsel %vm2267, %v2269, %v2265
        %v2271 = vmul.f32 1.0, %v2270
        %v2272 = vrcp.pop %v1946
        %v2273 = vmul.f32 %v1946, %v2272
        %v2274 = vsub.f32 1.0, %v2273
        %v2275 = vmul.f32 %v2272, %v2274
        %v2276 = vadd.f32 %v2272, %v2275
        %vm2277 = vweird.f32 %v1946
        %vm2278 = vweird.f32 %v2272
        %vm2279 = vmor %vm2277, %vm2278
        %v2280 = vsel %vm2279, %v2272, %v2276
        %v2281 = vand.u32 2147483647, %v1946
        %vm2282 = vcmp.eq.f32.partialorder %v2281, 8.507059e+37
        %v2283 = vand.u32 %v1946, 2147483648
        %v2284 = vor.u32 1.1754944e-38, %v2283
        %v2285 = vsel %vm2282, %v2284, %v2280
        %v2286 = vmul.f32 1.0, %v2285
        %v2287 = vrcp.pop %v1947
        %v2288 = vmul.f32 %v1947, %v2287
        %v2289 = vsub.f32 1.0, %v2288
        %v2290 = vmul.f32 %v2287, %v2289
        %v2291 = vadd.f32 %v2287, %v2290
        %vm2292 = vweird.f32 %v1947
        %vm2293 = vweird.f32 %v2287
        %vm2294 = vmor %vm2292, %vm2293
        %v2295 = vsel %vm2294, %v2287, %v2291
        %v2296 = vand.u32 2147483647, %v1947
        %vm2297 = vcmp.eq.f32.partialorder %v2296, 8.507059e+37
        %v2298 = vand.u32 %v1947, 2147483648
        %v2299 = vor.u32 1.1754944e-38, %v2298
        %v2300 = vsel %vm2297, %v2299, %v2295
        %v2301 = vmul.f32 1.0, %v2300
        %v2302 = vrcp.pop %v1948
        %v2303 = vmul.f32 %v1948, %v2302
        %v2304 = vsub.f32 1.0, %v2303
        %v2305 = vmul.f32 %v2302, %v2304
        %v2306 = vadd.f32 %v2302, %v2305
        %vm2307 = vweird.f32 %v1948
        %vm2308 = vweird.f32 %v2302
        %vm2309 = vmor %vm2307, %vm2308
        %v2310 = vsel %vm2309, %v2302, %v2306
        %v2311 = vand.u32 2147483647, %v1948
        %vm2312 = vcmp.eq.f32.partialorder %v2311, 8.507059e+37
        %v2313 = vand.u32 %v1948, 2147483648
        %v2314 = vor.u32 1.1754944e-38, %v2313
        %v2315 = vsel %vm2312, %v2314, %v2310
        %v2316 = vmul.f32 1.0, %v2315
        %v2317 = vrcp.pop %v1949
        %v2318 = vmul.f32 %v1949, %v2317
        %v2319 = vsub.f32 1.0, %v2318
        %v2320 = vmul.f32 %v2317, %v2319
        %v2321 = vadd.f32 %v2317, %v2320
        %vm2322 = vweird.f32 %v1949
        %vm2323 = vweird.f32 %v2317
        %vm2324 = vmor %vm2322, %vm2323
        %v2325 = vsel %vm2324, %v2317, %v2321
        %v2326 = vand.u32 2147483647, %v1949
        %vm2327 = vcmp.eq.f32.partialorder %v2326, 8.507059e+37
        %v2328 = vand.u32 %v1949, 2147483648
        %v2329 = vor.u32 1.1754944e-38, %v2328
        %v2330 = vsel %vm2327, %v2329, %v2325
        %v2331 = vmul.f32 1.0, %v2330
        %v2332 = vrcp.pop %v1950
        %v2333 = vmul.f32 %v1950, %v2332
        %v2334 = vsub.f32 1.0, %v2333
        %v2335 = vmul.f32 %v2332, %v2334
        %v2336 = vadd.f32 %v2332, %v2335
        %vm2337 = vweird.f32 %v1950
        %vm2338 = vweird.f32 %v2332
        %vm2339 = vmor %vm2337, %vm2338
        %v2340 = vsel %vm2339, %v2332, %v2336
        %v2341 = vand.u32 2147483647, %v1950
        %vm2342 = vcmp.eq.f32.partialorder %v2341, 8.507059e+37
        %v2343 = vand.u32 %v1950, 2147483648
        %v2344 = vor.u32 1.1754944e-38, %v2343
        %v2345 = vsel %vm2342, %v2344, %v2340
        %v2346 = vmul.f32 1.0, %v2345
        %v2347 = vrcp.pop %v1951
        %v2348 = vmul.f32 %v1951, %v2347
        %v2349 = vsub.f32 1.0, %v2348
        %v2350 = vmul.f32 %v2347, %v2349
        %v2351 = vadd.f32 %v2347, %v2350
        %vm2352 = vweird.f32 %v1951
        %vm2353 = vweird.f32 %v2347
        %vm2354 = vmor %vm2352, %vm2353
        %v2355 = vsel %vm2354, %v2347, %v2351
        %v2356 = vand.u32 2147483647, %v1951
        %vm2357 = vcmp.eq.f32.partialorder %v2356, 8.507059e+37
        %v2358 = vand.u32 %v1951, 2147483648
        %v2359 = vor.u32 1.1754944e-38, %v2358
        %v2360 = vsel %vm2357, %v2359, %v2355
        %v2361 = vmul.f32 1.0, %v2360
        %v2362 = vrcp.pop %v1952
        %v2363 = vmul.f32 %v1952, %v2362
        %v2364 = vsub.f32 1.0, %v2363
        %v2365 = vmul.f32 %v2362, %v2364
        %v2366 = vadd.f32 %v2362, %v2365
        %vm2367 = vweird.f32 %v1952
        %vm2368 = vweird.f32 %v2362
        %vm2369 = vmor %vm2367, %vm2368
        %v2370 = vsel %vm2369, %v2362, %v2366
        %v2371 = vand.u32 2147483647, %v1952
        %vm2372 = vcmp.eq.f32.partialorder %v2371, 8.507059e+37
        %v2373 = vand.u32 %v1952, 2147483648
        %v2374 = vor.u32 1.1754944e-38, %v2373
        %v2375 = vsel %vm2372, %v2374, %v2370
        %v2376 = vmul.f32 1.0, %v2375
        %v2377 = vrcp.pop %v1953
        %v2378 = vmul.f32 %v1953, %v2377
        %v2379 = vsub.f32 1.0, %v2378
        %v2380 = vmul.f32 %v2377, %v2379
        %v2381 = vadd.f32 %v2377, %v2380
        %vm2382 = vweird.f32 %v1953
        %vm2383 = vweird.f32 %v2377
        %vm2384 = vmor %vm2382, %vm2383
        %v2385 = vsel %vm2384, %v2377, %v2381
        %v2386 = vand.u32 2147483647, %v1953
        %vm2387 = vcmp.eq.f32.partialorder %v2386, 8.507059e+37
        %v2388 = vand.u32 %v1953, 2147483648
        %v2389 = vor.u32 1.1754944e-38, %v2388
        %v2390 = vsel %vm2387, %v2389, %v2385
        %v2391 = vmul.f32 1.0, %v2390
        %v2392 = vrcp.pop %v1954
        %v2393 = vmul.f32 %v1954, %v2392
        %v2394 = vsub.f32 1.0, %v2393
        %v2395 = vmul.f32 %v2392, %v2394
        %v2396 = vadd.f32 %v2392, %v2395
        %vm2397 = vweird.f32 %v1954
        %vm2398 = vweird.f32 %v2392
        %vm2399 = vmor %vm2397, %vm2398
        %v2400 = vsel %vm2399, %v2392, %v2396
        %v2401 = vand.u32 2147483647, %v1954
        %vm2402 = vcmp.eq.f32.partialorder %v2401, 8.507059e+37
        %v2403 = vand.u32 %v1954, 2147483648
        %v2404 = vor.u32 1.1754944e-38, %v2403
        %v2405 = vsel %vm2402, %v2404, %v2400
        %v2406 = vmul.f32 1.0, %v2405
        %v2407 = vrcp.pop %v1955
        %v2408 = vmul.f32 %v1955, %v2407
        %v2409 = vsub.f32 1.0, %v2408
        %v2410 = vmul.f32 %v2407, %v2409
        %v2411 = vadd.f32 %v2407, %v2410
        %vm2412 = vweird.f32 %v1955
        %vm2413 = vweird.f32 %v2407
        %vm2414 = vmor %vm2412, %vm2413
        %v2415 = vsel %vm2414, %v2407, %v2411
        %v2416 = vand.u32 2147483647, %v1955
        %vm2417 = vcmp.eq.f32.partialorder %v2416, 8.507059e+37
        %v2418 = vand.u32 %v1955, 2147483648
        %v2419 = vor.u32 1.1754944e-38, %v2418
        %v2420 = vsel %vm2417, %v2419, %v2415
        %v2421 = vmul.f32 1.0, %v2420
        %v2422 = vrcp.pop %v1956
        %v2423 = vmul.f32 %v1956, %v2422
        %v2424 = vsub.f32 1.0, %v2423
        %v2425 = vmul.f32 %v2422, %v2424
        %v2426 = vadd.f32 %v2422, %v2425
        %vm2427 = vweird.f32 %v1956
        %vm2428 = vweird.f32 %v2422
        %vm2429 = vmor %vm2427, %vm2428
        %v2430 = vsel %vm2429, %v2422, %v2426
        %v2431 = vand.u32 2147483647, %v1956
        %vm2432 = vcmp.eq.f32.partialorder %v2431, 8.507059e+37
        %v2433 = vand.u32 %v1956, 2147483648
        %v2434 = vor.u32 1.1754944e-38, %v2433
        %v2435 = vsel %vm2432, %v2434, %v2430
        %v2436 = vmul.f32 1.0, %v2435
        %2437 = vst [vmem:[%s362] sm:$0xff] %v1971
        %2438 = vst [vmem:[%s362 + $0x8] sm:$0xff] %v1986
        %2439 = vst [vmem:[%s362 + $0x10] sm:$0xff] %v2001
        %2440 = vst [vmem:[%s362 + $0x18] sm:$0xff] %v2016
        %2441 = vst [vmem:[%s362 + $0x20] sm:$0xff] %v2031
        %2442 = vst [vmem:[%s362 + $0x28] sm:$0xff] %v2046
        %2443 = vst [vmem:[%s362 + $0x30] sm:$0xff] %v2061
        %2444 = vst [vmem:[%s362 + $0x38] sm:$0xff] %v2076
        %2445 = vst [vmem:[%s362 + $0x40] sm:$0xff] %v2091
        %2446 = vst [vmem:[%s362 + $0x48] sm:$0xff] %v2106
        %2447 = vst [vmem:[%s362 + $0x50] sm:$0xff] %v2121
        %2448 = vst [vmem:[%s362 + $0x58] sm:$0xff] %v2136
        %2449 = vst [vmem:[%s362 + $0x60] sm:$0xff] %v2151
        %2450 = vst [vmem:[%s362 + $0x68] sm:$0xff] %v2166
        %2451 = vst [vmem:[%s362 + $0x70] sm:$0xff] %v2181
        %2452 = vst [vmem:[%s362 + $0x78] sm:$0xff] %v2196
        %2453 = vst [vmem:[%s362 + $0x80] sm:$0xff] %v2211
        %2454 = vst [vmem:[%s362 + $0x88] sm:$0xff] %v2226
        %2455 = vst [vmem:[%s362 + $0x90] sm:$0xff] %v2241
        %2456 = vst [vmem:[%s362 + $0x98] sm:$0xff] %v2256
        %2457 = vst [vmem:[%s362 + $0xa0] sm:$0xff] %v2271
        %2458 = vst [vmem:[%s362 + $0xa8] sm:$0xff] %v2286
        %2459 = vst [vmem:[%s362 + $0xb0] sm:$0xff] %v2301
        %2460 = vst [vmem:[%s362 + $0xb8] sm:$0xff] %v2316
        %2461 = vst [vmem:[%s362 + $0xc0] sm:$0xff] %v2331
        %2462 = vst [vmem:[%s362 + $0xc8] sm:$0xff] %v2346
        %2463 = vst [vmem:[%s362 + $0xd0] sm:$0xff] %v2361
        %2464 = vst [vmem:[%s362 + $0xd8] sm:$0xff] %v2376
        %2465 = vst [vmem:[%s362 + $0xe0] sm:$0xff] %v2391
        %2466 = vst [vmem:[%s362 + $0xe8] sm:$0xff] %v2406
        %2467 = vst [vmem:[%s362 + $0xf0] sm:$0xff] %v2421
        %2468 = vst [vmem:[%s362 + $0xf8] sm:$0xff] %v2436
        %s2469 = sand.u32 %s186, 1
        %s2470 = scalar_lea.sflag [#allocation4], %s2469
        %s2471 = sand.u32 %s186, 1
        %s2472 = smul.addr %s2471, 256
        %s2473 = scalar_lea.vmem [#allocation11], %s2472
        // Predicated region
        $region69: #{tpu_custom_call.1} parent=47 // pred_check
          %p2474 = pneg %p196
        $region70: #{tpu_custom_call.1} parent=47 // pred_check_branch
          %2476 = sbr.rel (%p2474) target = $region72
        $region71: #{tpu_custom_call.1} parent=47 // pred_region
          %s2477 = smul.u32 32, %s26
          %2479 = vsyncadd %s2470, 0
          %s2480 = smul.addr %s2477, 8
          %s2481 = scalar_lea.hbm %s7, %s2480
          %s2482 = sshll.u32 %s2473, 4
          %s2483 = int_to_ptr.vmem [resolvable:$true] %s2482
          %s2484 = sshll.u32 %s2481, 4
          %s2485 = int_to_ptr.hbm [resolvable:$true] %s2484
          %2490 = dma.vmem_to_hbm [thread:$0]  %s2483, 4096, %s2485, %s2470, 128, 128, 8
        $region72: #{tpu_custom_call.1} parent=47 // pred_fallthru
          _
      $region48: #{tpu_custom_call.1} parent=5 // pred_fallthru
        _
      %p2491 = scmp.le.s32.totalorder 2, %s21
      // Predicated region
      $region73: #{tpu_custom_call.1} parent=5 // pred_check
        %p2492 = pneg %p2491
      $region74: #{tpu_custom_call.1} parent=5 // pred_check_branch
        %2494 = sbr.rel (%p2492) target = $region76
      $region75: #{tpu_custom_call.1} parent=5 // pred_region
        %s2495 = ssub.s32 %s21, 2
        // Predicated region
        $region77: #{tpu_custom_call.1} parent=75 // pred_check
          %p2496 = pneg %p202
        $region78: #{tpu_custom_call.1} parent=75 // pred_check_branch
          %2498 = sbr.rel (%p2496) target = $region80
        $region79: #{tpu_custom_call.1} parent=75 // pred_region
          %s2499 = sand.u32 %s187, 1
          %s2500 = scalar_lea.sflag [#allocation4], %s2499
          %s2501 = sand.u32 %s187, 1
          %s2502 = smul.addr %s2501, 256
          %s2503 = scalar_lea.vmem [#allocation11], %s2502
          %2505 = dma.done %s2500, 4096
        $region80: #{tpu_custom_call.1} parent=75 // pred_fallthru
          _
      $region76: #{tpu_custom_call.1} parent=5 // pred_fallthru
        _
    $region6: #{tpu_custom_call.1} parent=1 // loop_footer
      %s25 = sadd.s32 1, %s21
    $region7: #{tpu_custom_call.1} parent=1 // loop_footer_branch
      %20 = sbr.rel target = $region3
    $region8: #{tpu_custom_call.1} parent=1 // loop_exit
      _
    %2506 = vsyncpa [#allocation3], 1
    %s2507 = scalar_lea.sflag [#allocation3], 1
    %2508 = vsyncpa %s2507, 1
    %2509 = vsyncpa [#allocation6], 1
    %2510 = vsyncpa [#allocation9], 1
    %2511 = vsyncpa [#allocation4], 1
    %s2512 = scalar_lea.sflag [#allocation4], 1
    %2513 = vsyncpa %s2512, 1

</llo_original>
